<compile_context>
chip_gen: v7x
topology: tpu7x:2x2x1
jax: 0.10.0
libtpu: 0.0.40
codegen_flags: <defaults>
</compile_context>

<pallas_src>
import functools

import jax
import jax.numpy as jnp
from jax import lax
from jax.experimental import pallas as pl
from jax.experimental.pallas import tpu as pltpu

_VMEM_LIMIT = 48 * 1024 * 1024


def _round_up(x, m):
    return (x + m - 1) // m * m


def _pick_tile(padded, base, cap):
    """Largest multiple of `base` that divides `padded` and is <= cap."""
    t = min(cap, padded)
    while padded % t:
        t -= base
    return t


# ----------------------------- Pallas matmul --------------------------------

def _matmul_kernel(a_ref, b_ref, o_ref, acc_ref, *, act):
    @pl.when(pl.program_id(2) == 0)
    def _init():
        acc_ref[...] = jnp.zeros_like(acc_ref)

    acc_ref[...] += jnp.dot(a_ref[...], b_ref[...],
                            preferred_element_type=jnp.float32)

    @pl.when(pl.program_id(2) == pl.num_programs(2) - 1)
    def _finish():
        y = acc_ref[...]
        if act == "tanh":
            y = jnp.tanh(y)           # EUP op: free in the matmul epilogue
        o_ref[...] = y


def matmul_pallas(a, wp, act="none"):
    """a: (M, K) patches/activations; wp["w"]: pre-packed, pre-padded bf16 (Kp, Np).

    bf16 MXU operands with an f32 VMEM accumulator, (M, N, K) grid tiling,
    optional fused tanh epilogue.  Returns f32 (M, wp["n"]).
    """
    M, K = a.shape
    Kp, Np = wp["w"].shape
    TM = 256 if M >= 256 else _round_up(M, 8)
    Mp = _round_up(M, TM)
    TK = _pick_tile(Kp, 128, 512)
    TN = _pick_tile(Np, 128, 256)
    a_p = jnp.pad(a.astype(jnp.bfloat16), ((0, Mp - M), (0, Kp - K)))
    out = pl.pallas_call(
        functools.partial(_matmul_kernel, act=act),
        out_shape=jax.ShapeDtypeStruct((Mp, Np), jnp.float32),
        grid=(Mp // TM, Np // TN, Kp // TK),
        in_specs=[pl.BlockSpec((TM, TK), lambda i, j, k: (i, k)),
                  pl.BlockSpec((TK, TN), lambda i, j, k: (k, j))],
        out_specs=pl.BlockSpec((TM, TN), lambda i, j, k: (i, j)),
        scratch_shapes=[pltpu.VMEM((TM, TN), jnp.float32)],
        compiler_params=pltpu.CompilerParams(
            dimension_semantics=("parallel", "parallel", "arbitrary"),
            vmem_limit_bytes=_VMEM_LIMIT),
    )(a_p, wp["w"])
    return out[:M, :wp["n"]]


# -------------------- Pallas instance norm (+ReLU, +residual) ----------------

def _instance_norm_kernel(*refs, act, has_residual):
    if has_residual:
        x_ref, g_ref, b_ref, r_ref, o_ref = refs
    else:
        x_ref, g_ref, b_ref, o_ref = refs
        r_ref = None
    x = x_ref[...]                                           # (1, H*W, C) f32
    mean = jnp.mean(x, axis=1, keepdims=True)
    var = jnp.mean(jnp.square(x - mean), axis=1, keepdims=True)  # biased (PyTorch IN)
    y = (x - mean) * lax.rsqrt(var + 1e-5)
    y = y * g_ref[...] + b_ref[...]
    if act == "relu":
        y = jnp.maximum(y, 0.0)
    if r_ref is not None:
        y = y + r_ref[...]                                   # fused residual add
    o_ref[...] = y


def instance_norm_pallas(x, gamma, beta, act="none", residual=None):
    """x: (B, H, W, C) f32; per-(b, c) statistics over H*W (PyTorch InstanceNorm2d)."""
    B, H, W, C = x.shape
    HW = H * W
    x3 = x.reshape(B, HW, C).astype(jnp.float32)
    g = gamma.reshape(1, 1, C).astype(jnp.float32)
    b = beta.reshape(1, 1, C).astype(jnp.float32)
    has_res = residual is not None

    row_spec = pl.BlockSpec((1, HW, C), lambda i: (i, 0, 0))
    par_spec = pl.BlockSpec((1, 1, C), lambda i: (0, 0, 0))
    in_specs = [row_spec, par_spec, par_spec]
    args = [x3, g, b]
    if has_res:
        in_specs.append(row_spec)
        args.append(residual.reshape(B, HW, C).astype(jnp.float32))

    out = pl.pallas_call(
        functools.partial(_instance_norm_kernel, act=act, has_residual=has_res),
        out_shape=jax.ShapeDtypeStruct((B, HW, C), jnp.float32),
        grid=(B,),
        in_specs=in_specs,
        out_specs=row_spec,
        compiler_params=pltpu.CompilerParams(
            dimension_semantics=("parallel",),
            vmem_limit_bytes=_VMEM_LIMIT),
    )(*args)
    return out.reshape(B, H, W, C)


# --------------------------- weight pre-packing ------------------------------

def _pack_conv_weight(w):
    """w: (Cout, Cin, kh, kw) PyTorch Conv2d weight -> padded bf16 (K, N) matrix."""
    Cout, Cin, kh, kw = w.shape
    K, N = Cin * kh * kw, Cout
    wm = jnp.transpose(w.reshape(Cout, K)).astype(jnp.bfloat16)   # feature order (ci, ky, kx)
    Kp, Np = _round_up(K, 128), _round_up(N, 128)
    return {"w": jnp.pad(wm, ((0, Kp - K), (0, Np - N))),
            "k": K, "n": N, "kh": kh, "kw": kw}


def _pack_deconv_weight(w):
    """w: (Cin, Cout, 4, 4) PyTorch ConvTranspose2d(stride=2, padding=1) weight.

    Packs the transposed conv as a single (Cin*9, 4*Cout) matrix acting on 3x3
    input patches; the output column block (r, s) holds the parity-(r, s)
    sub-kernel, so no zero-dilated activation is needed.
        Y[2m+r, 2n+s] = sum_{py in {r,r+1}, px in {s,s+1}}
                        X[m+py-1, n+px-1] * W[:, :, 3+r-2*py, 3+s-2*px]
    """
    Cin, Cout = w.shape[0], w.shape[1]
    wt = jnp.zeros((Cin, 3, 3, 2, 2, Cout), jnp.float32)
    for r in (0, 1):
        for s in (0, 1):
            for py in (r, r + 1):
                for px in (s, s + 1):
                    kr = 3 + r - 2 * py
                    kc = 3 + s - 2 * px
                    wt = wt.at[:, py, px, r, s, :].set(w[:, :, kr, kc])
    K, N = Cin * 9, 4 * Cout
    wm = wt.reshape(K, N).astype(jnp.bfloat16)
    Kp, Np = _round_up(K, 128), _round_up(N, 128)
    return {"w": jnp.pad(wm, ((0, Kp - K), (0, Np - N))), "k": K, "n": N}


def pack_generator_params(p):
    return {
        "conv0": _pack_conv_weight(p["conv0_w"]),
        "in0": p["in0"],
        "down": [{"w": _pack_conv_weight(d["w"]), "in": d["in"]} for d in p["down"]],
        "res": [{"w1": _pack_conv_weight(r["w1"]), "in1": r["in1"],
                 "w2": _pack_conv_weight(r["w2"]), "in2": r["in2"]} for r in p["res"]],
        "up": [{"w": _pack_deconv_weight(u["w"]), "in": u["in"]} for u in p["up"]],
        "conv_last": _pack_conv_weight(p["conv_last_w"]),
    }


# ------------------------------- conv wrappers -------------------------------

def conv2d_pallas(x, wp, stride, pad, act="none"):
    """x: (B, H, W, Cin) NHWC; wp: packed PyTorch Conv2d weight (bias=False)."""
    B = x.shape[0]
    patches = lax.conv_general_dilated_patches(
        x.astype(jnp.bfloat16),
        filter_shape=(wp["kh"], wp["kw"]),
        window_strides=(stride, stride),
        padding=[(pad, pad), (pad, pad)],
        dimension_numbers=("NHWC", "HWIO", "NHWC"))
    _, oh, ow, K = patches.shape
    assert K == wp["k"]
    y = matmul_pallas(patches.reshape(B * oh * ow, K), wp, act=act)
    return y.reshape(B, oh, ow, wp["n"])


def conv_transpose2d_pallas(x, wp):
    """ConvTranspose2d(kernel=4, stride=2, padding=1) via sub-pixel decomposition."""
    B, H, W, _ = x.shape
    patches = lax.conv_general_dilated_patches(
        x.astype(jnp.bfloat16),
        filter_shape=(3, 3), window_strides=(1, 1), padding=[(1, 1), (1, 1)],
        dimension_numbers=("NHWC", "HWIO", "NHWC"))
    K = patches.shape[-1]
    assert K == wp["k"]
    y = matmul_pallas(patches.reshape(B * H * W, K), wp)        # (B*H*W, 4*Cout)
    cout = wp["n"] // 4
    y = y.reshape(B, H, W, 2, 2, cout)                          # (..., r, s, Cout)
    y = jnp.transpose(y, (0, 1, 3, 2, 4, 5)).reshape(B, 2 * H, 2 * W, cout)
    return y


# -------------------------- Generator parameters ----------------------------

def init_generator_params(key, conv_dim=8, c_dim=5, repeat_num=2):
    def nxt():
        nonlocal key
        key, sub = jax.random.split(key)
        return sub

    def conv_w(cout, cin, k):
        fan_in = cin * k * k
        return jax.random.normal(nxt(), (cout, cin, k, k), jnp.float32) / jnp.sqrt(fan_in)

    def in_params(c):
        gamma = 1.0 + 0.1 * jax.random.normal(nxt(), (c,), jnp.float32)
        beta = 0.1 * jax.random.normal(nxt(), (c,), jnp.float32)
        return gamma, beta

    p = {"conv0_w": conv_w(conv_dim, 3 + c_dim, 7), "in0": in_params(conv_dim)}
    curr = conv_dim
    downs = []
    for _ in range(2):
        downs.append({"w": conv_w(curr * 2, curr, 4), "in": in_params(curr * 2)})
        curr *= 2
    p["down"] = downs
    p["res"] = [{"w1": conv_w(curr, curr, 3), "in1": in_params(curr),
                 "w2": conv_w(curr, curr, 3), "in2": in_params(curr)}
                for _ in range(repeat_num)]
    ups = []
    for _ in range(2):
        fan_in = curr * 4 * 4
        w = jax.random.normal(nxt(), (curr, curr // 2, 4, 4), jnp.float32) / jnp.sqrt(fan_in)
        ups.append({"w": w, "in": in_params(curr // 2)})
        curr //= 2
    p["up"] = ups
    p["conv_last_w"] = conv_w(3, curr, 7)
    return p


# ----------------------------- Pallas forward --------------------------------

def generator_forward(packed, x_nchw, c):
    """Pallas forward.  x_nchw: (B, 3, H, W), c: (B, c_dim) -> (B, 3, H, W)."""
    B, _, H, W = x_nchw.shape
    x = jnp.transpose(x_nchw, (0, 2, 3, 1)).astype(jnp.float32)       # NHWC, once
    cmap = jnp.broadcast_to(c[:, None, None, :].astype(jnp.float32),
                            (B, H, W, c.shape[1]))
    h = jnp.concatenate([x, cmap], axis=-1)

    h = conv2d_pallas(h, packed["conv0"], stride=1, pad=3)
    h = instance_norm_pallas(h, *packed["in0"], act="relu")

    for d in packed["down"]:
        h = conv2d_pallas(h, d["w"], stride=2, pad=1)
        h = instance_norm_pallas(h, *d["in"], act="relu")

    for r in packed["res"]:
        hh = conv2d_pallas(h, r["w1"], stride=1, pad=1)
        hh = instance_norm_pallas(hh, *r["in1"], act="relu")
        hh = conv2d_pallas(hh, r["w2"], stride=1, pad=1)
        h = instance_norm_pallas(hh, *r["in2"], act="none", residual=h)  # fused add

    for u in packed["up"]:
        h = conv_transpose2d_pallas(h, u["w"])
        h = instance_norm_pallas(h, *u["in"], act="relu")

    h = conv2d_pallas(h, packed["conv_last"], stride=1, pad=3, act="tanh")  # fused tanh
    return jnp.transpose(h, (0, 3, 1, 2))                                   # back to NCHW


# -------------------------- pure-JAX f32 reference ----------------------------

def _ref_conv(x, w, stride, pad):
    return lax.conv_general_dilated(
        x, w, (stride, stride), [(pad, pad), (pad, pad)],
        dimension_numbers=("NCHW", "OIHW", "NCHW"),
        precision=lax.Precision.HIGHEST)


def _ref_conv_transpose(x, w_t, stride, pad):
    kh = w_t.shape[2]
    w_conv = jnp.flip(w_t, (2, 3)).transpose(1, 0, 2, 3)
    return lax.conv_general_dilated(
        x, w_conv, (1, 1), [(kh - 1 - pad, kh - 1 - pad)] * 2,
        lhs_dilation=(stride, stride),
        dimension_numbers=("NCHW", "OIHW", "NCHW"),
        precision=lax.Precision.HIGHEST)


def _ref_instance_norm(x, gamma, beta, act="none"):
    mean = x.mean(axis=(2, 3), keepdims=True)
    var = ((x - mean) ** 2).mean(axis=(2, 3), keepdims=True)
    y = (x - mean) * lax.rsqrt(var + 1e-5)
    y = y * gamma[None, :, None, None] + beta[None, :, None, None]
    return jnp.maximum(y, 0.0) if act == "relu" else y


def reference_forward(params, x, c):
    B, _, H, W = x.shape
    cmap = jnp.broadcast_to(c[:, :, None, None], (B, c.shape[1], H, W)).astype(x.dtype)
    h = jnp.concatenate([x, cmap], axis=1)
    h = _ref_conv(h, params["conv0_w"], 1, 3)
    h = _ref_instance_norm(h, *params["in0"], act="relu")
    for d in params["down"]:
        h = _ref_conv(h, d["w"], 2, 1)
        h = _ref_instance_norm(h, *d["in"], act="relu")
    for r in params["res"]:
        hh = _ref_conv(h, r["w1"], 1, 1)
        hh = _ref_instance_norm(hh, *r["in1"], act="relu")
        hh = _ref_conv(hh, r["w2"], 1, 1)
        hh = _ref_instance_norm(hh, *r["in2"], act="none")
        h = h + hh
    for u in params["up"]:
        h = _ref_conv_transpose(h, u["w"], 2, 1)
        h = _ref_instance_norm(h, *u["in"], act="relu")
    h = _ref_conv(h, params["conv_last_w"], 1, 3)
    return jnp.tanh(h)


# --------------------------------- main --------------------------------------

if __name__ == "__main__":
    key = jax.random.PRNGKey(0)
    kp, kx, kc = jax.random.split(key, 3)

    conv_dim, c_dim, repeat_num = 8, 5, 2   # small config; same architecture as PyTorch
    params = init_generator_params(kp, conv_dim=conv_dim, c_dim=c_dim,
                                   repeat_num=repeat_num)
    packed = pack_generator_params(params)

    x = jax.random.normal(kx, (2, 3, 16, 16), jnp.float32)   # NCHW, like PyTorch
    c = jax.random.normal(kc, (2, c_dim), jnp.float32)

    out = generator_forward(packed, x, c)
    out = jax.block_until_ready(out)
    assert out.shape == (2, 3, 16, 16), out.shape

    ref = reference_forward(params, x, c)
    ref = jax.block_until_ready(ref)
    max_err = float(jnp.max(jnp.abs(out - ref)))
    # bf16 MXU operands (f32 accumulation) vs. an f32 reference over ~12 conv
    # layers: allow a loose-but-meaningful tolerance (a real bug gives O(1) errors).
    assert max_err < 0.15, f"max_err={max_err}"

    print("KERNEL_OK")
</pallas_src>

<mosaic_0001>
module attributes {stable_mosaic.version = 11 : i64} {
  func.func @_matmul_kernel(%arg0: i32, %arg1: i32, %arg2: i32, %arg3: memref<256x512xbf16, #tpu.memory_space<vmem>>, %arg4: memref<512x128xbf16, #tpu.memory_space<vmem>>, %arg5: memref<256x128xf32, #tpu.memory_space<vmem>>, %arg6: memref<256x128xf32, #tpu.memory_space<vmem>>) attributes {dimension_semantics = [#tpu.dimension_semantics<parallel>, #tpu.dimension_semantics<parallel>, #tpu.dimension_semantics<arbitrary>], iteration_bounds = array<i64: 2, 1, 1>, scalar_prefetch = 0 : i64, scratch_operands = 1 : i64, tpu.core_type = #tpu.core_type<tc>, window_params = [{transform_indices = @transform_0, window_bounds = array<i64: 256, 512>}, {transform_indices = @transform_1, window_bounds = array<i64: 512, 128>}, {transform_indices = @transform_2, window_bounds = array<i64: 256, 128>}]} {
    %c0_i32 = arith.constant 0 : i32
    %0 = arith.cmpi eq, %arg2, %c0_i32 : i32
    %1 = arith.extui %0 : i1 to i32
    %c0_i32_0 = arith.constant 0 : i32
    %2 = arith.cmpi ne, %1, %c0_i32_0 : i32
    scf.if %2 {
      %cst_10 = arith.constant 0.000000e+00 : f32
      %12 = vector.broadcast %cst_10 : f32 to vector<256x128xf32>
      %c0_11 = arith.constant 0 : index
      %c0_12 = arith.constant 0 : index
      %13 = vector.load %arg6[%c0_11, %c0_12] : memref<256x128xf32, #tpu.memory_space<vmem>>, vector<256x128xf32>
      tpu.vector_store %arg6[%c0_11, %c0_12], %12 {strides = array<i32>} : memref<256x128xf32, #tpu.memory_space<vmem>>, vector<256x128xf32>,
    } else {
    }
    %c0 = arith.constant 0 : index
    %c0_1 = arith.constant 0 : index
    %3 = vector.load %arg6[%c0, %c0_1] : memref<256x128xf32, #tpu.memory_space<vmem>>, vector<256x128xf32>
    %c0_2 = arith.constant 0 : index
    %c0_3 = arith.constant 0 : index
    %4 = vector.load %arg3[%c0_2, %c0_3] : memref<256x512xbf16, #tpu.memory_space<vmem>>, vector<256x512xbf16>
    %c0_4 = arith.constant 0 : index
    %c0_5 = arith.constant 0 : index
    %5 = vector.load %arg4[%c0_4, %c0_5] : memref<512x128xbf16, #tpu.memory_space<vmem>>, vector<512x128xbf16>
    %cst = arith.constant dense<0.000000e+00> : vector<256x128xf32>
    %6 = tpu.matmul %4, %5, %cst {dimension_numbers = #tpu.dot_dimension_numbers<[1], [0], [0], [1], [0, 0, 1, 1], [], []>} : vector<256x512xbf16>, vector<512x128xbf16>, vector<256x128xf32> -> vector<256x128xf32>
    %7 = arith.addf %3, %6 : vector<256x128xf32>
    %c0_6 = arith.constant 0 : index
    %c0_7 = arith.constant 0 : index
    %8 = vector.load %arg6[%c0_6, %c0_7] : memref<256x128xf32, #tpu.memory_space<vmem>>, vector<256x128xf32>
    tpu.vector_store %arg6[%c0_6, %c0_7], %7 {strides = array<i32>} : memref<256x128xf32, #tpu.memory_space<vmem>>, vector<256x128xf32>,
    %c0_i32_8 = arith.constant 0 : i32
    %9 = arith.cmpi eq, %arg2, %c0_i32_8 : i32
    %10 = arith.extui %9 : i1 to i32
    %c0_i32_9 = arith.constant 0 : i32
    %11 = arith.cmpi ne, %10, %c0_i32_9 : i32
    scf.if %11 {
      %c0_10 = arith.constant 0 : index
      %c0_11 = arith.constant 0 : index
      %12 = vector.load %arg6[%c0_10, %c0_11] : memref<256x128xf32, #tpu.memory_space<vmem>>, vector<256x128xf32>
      %c0_12 = arith.constant 0 : index
      %c0_13 = arith.constant 0 : index
      %13 = vector.load %arg5[%c0_12, %c0_13] : memref<256x128xf32, #tpu.memory_space<vmem>>, vector<256x128xf32>
      tpu.vector_store %arg5[%c0_12, %c0_13], %12 {strides = array<i32>} : memref<256x128xf32, #tpu.memory_space<vmem>>, vector<256x128xf32>,
    } else {
    }
    return
  }
  func.func @transform_0(%arg0: i32, %arg1: i32, %arg2: i32) -> (i32, i32) {
    %c0_i32 = arith.constant 0 : i32
    return %arg0, %arg2 : i32, i32
  }
  func.func @transform_1(%arg0: i32, %arg1: i32, %arg2: i32) -> (i32, i32) {
    %c0_i32 = arith.constant 0 : i32
    return %arg2, %arg1 : i32, i32
  }
  func.func @transform_2(%arg0: i32, %arg1: i32, %arg2: i32) -> (i32, i32) {
    %c0_i32 = arith.constant 0 : i32
    return %arg0, %arg1 : i32, i32
  }
}

</mosaic_0001>

<llo_original>
// kernel: tpu_custom_call.1
$region0: #{tpu_custom_call.1}
  #allocation0 [shape = 'u32[]', space=smem, size = 0x4, offset = 0x4, fixed_abs, tag = 'smem constant byte address 0x4 - core index']
  #allocation1 [shape = 'u32[144,128]{1,0:T(1,128)}', space=vmem, size = 0x12000, scoped, tag = 'internal scratch']
  #allocation2 [shape = 'f32[256,128]{1,0:T(8,128)}', space=vmem, size = 0x20000, scoped, tag = 'scratch operand']
  %s0 = inlined_call_operand.hbm [shape: bf16[512,512], index: 0, kind: input, shape index: {}]
  %s1 = inlined_call_operand.hbm [shape: bf16[512,128], index: 1, kind: input, shape index: {}]
  %s2 = inlined_call_operand.hbm [shape: f32[512,128], index: 2, kind: output, shape index: {}]
  %s3 = sld [smem:[#allocation0]]
  $region57: #{tpu_custom_call.1} parent=0
    _
  %s5 = ssub.s32 1, %s3
  %s6 = scalar_select 0, %s5, %s3
  $region1: #{tpu_custom_call.1} parent=0
    #allocation3 [shape = 'u8[524288]{0}', space=vmem, size = 0x80000, scoped, tag = 'input window, operand 0']
    #allocation4 [shape = 's32[2]{0}', space=sflag, size = 0x8, scoped, tag = 'scoped memory for tpu_custom_call.1']
    #allocation5 [shape = 's32[2]{0}', space=sflag, size = 0x8, scoped, tag = 'scoped memory for tpu_custom_call.1']
    #allocation6 [shape = 'u8[131072]{0}', space=vmem, size = 0x20000, scoped, tag = 'input window, operand 1, single buffered']
    #allocation7 [shape = 's32[1]{0}', space=sflag, size = 0x4, scoped, tag = 'scoped memory for tpu_custom_call.1']
    #allocation8 [shape = 'u8[262144]{0}', space=vmem, size = 0x40000, scoped, tag = 'output window, operand 0']
    %7 = vsyncpa [#allocation4], 0
    %s8 = scalar_lea.sflag [#allocation4], 1
    %9 = vsyncpa %s8, 0
    %10 = vsyncpa [#allocation7], 0
    %11 = vsyncpa [#allocation5], 0
    %s12 = scalar_lea.sflag [#allocation5], 1
    %13 = vsyncpa %s12, 0
    loop: start=0, step=1, limit=4
    $region2: #{tpu_custom_call.1} parent=1 // loop_pre_header
      _
    $region3: #{tpu_custom_call.1} parent=1 // loop_header
      %s15 = sphi 0, %s19
      %p16 = scmp.ge.s32.totalorder %s15, 4
      %s22 = sphi 0, %s41
      %s23 = sphi 0, %s37
      %s24 = sphi 0, %s33
      %s25 = sphi 0, %s22
      %s26 = sphi 0, %s23
      %s27 = sphi 0, %s24
      %s28 = sphi 0, %s25
      %s29 = sphi 0, %s26
      %s30 = sphi 0, %s27
      %s46 = sphi 0, %s48
      %s49 = sphi 0, %s46
      %s50 = sphi 0, %s49
      %s66 = sphi 0, %s50
      %s74 = sphi 0, %s76
      %s77 = sphi 0, %s74
      %s78 = sphi 0, %s77
      %s94 = sphi 0, %s78
      %s102 = sphi 0, %s104
      %s105 = sphi 0, %s102
      %s106 = sphi 0, %s105
      %s122 = sphi 0, %s106
    $region4: #{tpu_custom_call.1} parent=1 // loop_header_branch
      %18 = sbr.rel (%p16) target = $region8
    $region5: #{tpu_custom_call.1} parent=1 // loop_body
      %s20 = ssub.s32 %s15, 1
      %s21 = ssub.s32 %s15, 2
      %s31 = sadd.s32 1, %s24
      %p32 = scmp.ge.s32.totalorder %s31, 1
      %s33 = scalar_select %p32, 0, %s31
      %s34 = sadd.s32 1, %s23
      %s35 = scalar_select %p32, %s34, %s23
      %p36 = scmp.ge.s32.totalorder %s35, 1
      %s37 = scalar_select %p36, 0, %s35
      %s38 = sadd.s32 1, %s22
      %s39 = scalar_select %p36, %s38, %s22
      %p40 = scmp.ge.s32.totalorder %s39, 2
      %s41 = scalar_select %p40, 0, %s39
      %s42 = ssub.s32 %s22, %s41
      %s43 = ssub.s32 %s24, %s33
      %s44 = sor.u32 %s42, %s43
      %p45 = scmp.eq.s32.totalorder %s44, 0
      %s47 = sadd.s32 %s46, 1
      %s48 = scalar_select %p45, %s46, %s47
      %p51 = pneg %p45
      %p52 = scmp.eq.s32.totalorder %s15, 1
      %p53 = por %p51, %p52
      %p54 = scmp.ne.s32.totalorder %s46, %s49
      %p55 = scmp.eq.s32.totalorder %s15, 0
      %p56 = por %p54, %p55
      %p57 = scmp.ne.s32.totalorder %s46, %s49
      %p58 = scmp.eq.s32.totalorder %s20, 1
      %p59 = por %p57, %p58
      %p60 = scmp.ne.s32.totalorder %s49, %s50
      %p61 = scmp.eq.s32.totalorder %s20, 0
      %p62 = por %p60, %p61
      %p63 = scmp.ne.s32.totalorder %s49, %s50
      %p64 = scmp.eq.s32.totalorder %s21, 1
      %p65 = por %p63, %p64
      %p67 = scmp.ne.s32.totalorder %s50, %s66
      %p68 = scmp.eq.s32.totalorder %s21, 0
      %p69 = por %p67, %p68
      %s70 = ssub.s32 %s24, %s33
      %s71 = ssub.s32 %s23, %s37
      %s72 = sor.u32 %s70, %s71
      %p73 = scmp.eq.s32.totalorder %s72, 0
      %s75 = sadd.s32 %s74, 1
      %s76 = scalar_select %p73, %s74, %s75
      %p79 = pneg %p73
      %p80 = scmp.eq.s32.totalorder %s15, 1
      %p81 = por %p79, %p80
      %p82 = scmp.ne.s32.totalorder %s74, %s77
      %p83 = scmp.eq.s32.totalorder %s15, 0
      %p84 = por %p82, %p83
      %p85 = scmp.ne.s32.totalorder %s74, %s77
      %p86 = scmp.eq.s32.totalorder %s20, 1
      %p87 = por %p85, %p86
      %p88 = scmp.ne.s32.totalorder %s77, %s78
      %p89 = scmp.eq.s32.totalorder %s20, 0
      %p90 = por %p88, %p89
      %p91 = scmp.ne.s32.totalorder %s77, %s78
      %p92 = scmp.eq.s32.totalorder %s21, 1
      %p93 = por %p91, %p92
      %p95 = scmp.ne.s32.totalorder %s78, %s94
      %p96 = scmp.eq.s32.totalorder %s21, 0
      %p97 = por %p95, %p96
      %s98 = ssub.s32 %s22, %s41
      %s99 = ssub.s32 %s23, %s37
      %s100 = sor.u32 %s98, %s99
      %p101 = scmp.eq.s32.totalorder %s100, 0
      %s103 = sadd.s32 %s102, 1
      %s104 = scalar_select %p101, %s102, %s103
      %p107 = pneg %p101
      %p108 = scmp.eq.s32.totalorder %s15, 1
      %p109 = por %p107, %p108
      %p110 = scmp.ne.s32.totalorder %s102, %s105
      %p111 = scmp.eq.s32.totalorder %s15, 0
      %p112 = por %p110, %p111
      %p113 = scmp.ne.s32.totalorder %s102, %s105
      %p114 = scmp.eq.s32.totalorder %s20, 1
      %p115 = por %p113, %p114
      %p116 = scmp.ne.s32.totalorder %s105, %s106
      %p117 = scmp.eq.s32.totalorder %s20, 0
      %p118 = por %p116, %p117
      %p119 = scmp.ne.s32.totalorder %s105, %s106
      %p120 = scmp.eq.s32.totalorder %s21, 1
      %p121 = por %p119, %p120
      %p123 = scmp.ne.s32.totalorder %s106, %s122
      %p124 = scmp.eq.s32.totalorder %s21, 0
      %p125 = por %p123, %p124
      %p126 = scmp.le.s32.totalorder 1, %s15
      %p127 = scmp.lt.s32.totalorder %s15, 3
      %p128 = pnand %p126, %p127
      %p129 = pneg %p128
      // Predicated region
      $region9: #{tpu_custom_call.1} parent=5 // pred_check
        _
      $region10: #{tpu_custom_call.1} parent=5 // pred_check_branch
        %131 = sbr.rel (%p128) target = $region12
      $region11: #{tpu_custom_call.1} parent=5 // pred_region
        %s132 = ssub.s32 %s15, 1
        // Predicated region
        $region13: #{tpu_custom_call.1} parent=11 // pred_check
          %p133 = pneg %p90
        $region14: #{tpu_custom_call.1} parent=11 // pred_check_branch
          %135 = sbr.rel (%p133) target = $region16
        $region15: #{tpu_custom_call.1} parent=11 // pred_region
          %s136 = smul.u32 64, %s27
          %s138 = ssub.s32 4096, 4096
          %139 = vsyncadd [#allocation7], %s138
          %s140 = sadd.s32 %s26, %s136
          %s141 = smul.addr %s140, 64
          %s142 = scalar_lea.hbm %s1, %s141
          %s143 = sshll.u32 [#allocation6], 4
          %s144 = int_to_ptr.vmem [resolvable:$true] %s143
          %149 = dma.hbm_to_vmem [thread:$0]  %s142, 4096, %s144, [#allocation7], 64, 64, 4
        $region16: #{tpu_custom_call.1} parent=11 // pred_fallthru
          _
      $region12: #{tpu_custom_call.1} parent=5 // pred_fallthru
        _
      %p150 = scmp.lt.s32.totalorder %s15, 2
      // Predicated region
      $region17: #{tpu_custom_call.1} parent=5 // pred_check
        %p151 = pneg %p150
      $region18: #{tpu_custom_call.1} parent=5 // pred_check_branch
        %153 = sbr.rel (%p151) target = $region20
      $region19: #{tpu_custom_call.1} parent=5 // pred_region
        // Predicated region
        $region21: #{tpu_custom_call.1} parent=19 // pred_check
          %p154 = pneg %p56
        $region22: #{tpu_custom_call.1} parent=19 // pred_check_branch
          %156 = sbr.rel (%p154) target = $region24
        $region23: #{tpu_custom_call.1} parent=19 // pred_region
          %s157 = sand.u32 %s46, 1
          %s158 = scalar_lea.sflag [#allocation4], %s157
          %s159 = sand.u32 %s46, 1
          %s160 = smul.addr %s159, 512
          %s161 = scalar_lea.vmem [#allocation3], %s160
          %s162 = smul.u32 32, %s22
          %s163 = smul.u32 4, %s24
          %s165 = ssub.s32 8192, 8192
          %166 = vsyncadd %s158, %s165
          %s167 = smul.addr %s162, 4
          %s168 = sadd.s32 %s163, %s167
          %s169 = smul.addr %s168, 64
          %s170 = scalar_lea.hbm %s0, %s169
          %s171 = sshll.u32 %s161, 4
          %s172 = int_to_ptr.vmem [resolvable:$true] %s171
          %177 = dma.hbm_to_vmem [thread:$0]  %s170, 8192, %s172, %s158, 256, 256, 16
        $region24: #{tpu_custom_call.1} parent=19 // pred_fallthru
          _
      $region20: #{tpu_custom_call.1} parent=5 // pred_fallthru
        _
      %p178 = scmp.le.s32.totalorder 1, %s15
      %p179 = scmp.lt.s32.totalorder %s15, 3
      %p180 = pnand %p178, %p179
      %p181 = pneg %p180
      // Predicated region
      $region25: #{tpu_custom_call.1} parent=5 // pred_check
        _
      $region26: #{tpu_custom_call.1} parent=5 // pred_check_branch
        %183 = sbr.rel (%p180) target = $region28
      $region27: #{tpu_custom_call.1} parent=5 // pred_region
        %s184 = ssub.s32 %s15, 1
        %s185 = sand.u32 %s49, 1
        %s186 = scalar_lea.sflag [#allocation4], %s185
        %s187 = sand.u32 %s49, 1
        %s188 = smul.addr %s187, 512
        %s189 = scalar_lea.vmem [#allocation3], %s188
        // Predicated region
        $region29: #{tpu_custom_call.1} parent=27 // pred_check
          %p190 = pneg %p62
        $region30: #{tpu_custom_call.1} parent=27 // pred_check_branch
          %192 = sbr.rel (%p190) target = $region32
        $region31: #{tpu_custom_call.1} parent=27 // pred_region
          %193 = dma.done %s186, 8192
        $region32: #{tpu_custom_call.1} parent=27 // pred_fallthru
          _
        // Predicated region
        $region33: #{tpu_custom_call.1} parent=27 // pred_check
          %p194 = pneg %p90
        $region34: #{tpu_custom_call.1} parent=27 // pred_check_branch
          %196 = sbr.rel (%p194) target = $region36
        $region35: #{tpu_custom_call.1} parent=27 // pred_region
          %197 = dma.done [#allocation7], 4096
        $region36: #{tpu_custom_call.1} parent=27 // pred_fallthru
          _
        %s198 = sand.u32 %s49, 1
        %s199 = scalar_lea.sflag [#allocation4], %s198
        %s200 = sand.u32 %s49, 1
        %s201 = smul.addr %s200, 512
        %s202 = scalar_lea.vmem [#allocation3], %s201
        %p203 = pneg %p62
        %p204 = pneg %p59
        %p205 = pneg %p90
        %p206 = pneg %p87
        %p207 = pneg %p118
        %p208 = pneg %p115
        %s209 = sand.u32 %s105, 1
        %s210 = scalar_lea.sflag [#allocation5], %s209
        %s211 = sand.u32 %s105, 1
        %s212 = smul.addr %s211, 256
        %s213 = scalar_lea.vmem [#allocation8], %s212
        %s214 = smul.u32 32, %s25
        %s215 = smul.u32 4, %s27
        %s216 = smul.u32 64, %s27
        %s217 = smul.u32 32, %s25
        %p219 = scmp.eq.s32.totalorder %s27, 0
        // Predicated region
        $region37: #{tpu_custom_call.1} parent=27 // pred_check
          %p220 = pneg %p219
        $region38: #{tpu_custom_call.1} parent=27 // pred_check_branch
          %222 = sbr.rel (%p220) target = $region40
        $region39: #{tpu_custom_call.1} parent=27 // pred_region
          %223 = vst [vmem:[#allocation2] sm:$0xff] 0.0
          %224 = vst [vmem:[#allocation2 + $0x8] sm:$0xff] 0.0
          %225 = vst [vmem:[#allocation2 + $0x10] sm:$0xff] 0.0
          %226 = vst [vmem:[#allocation2 + $0x18] sm:$0xff] 0.0
          %227 = vst [vmem:[#allocation2 + $0x20] sm:$0xff] 0.0
          %228 = vst [vmem:[#allocation2 + $0x28] sm:$0xff] 0.0
          %229 = vst [vmem:[#allocation2 + $0x30] sm:$0xff] 0.0
          %230 = vst [vmem:[#allocation2 + $0x38] sm:$0xff] 0.0
          %231 = vst [vmem:[#allocation2 + $0x40] sm:$0xff] 0.0
          %232 = vst [vmem:[#allocation2 + $0x48] sm:$0xff] 0.0
          %233 = vst [vmem:[#allocation2 + $0x50] sm:$0xff] 0.0
          %234 = vst [vmem:[#allocation2 + $0x58] sm:$0xff] 0.0
          %235 = vst [vmem:[#allocation2 + $0x60] sm:$0xff] 0.0
          %236 = vst [vmem:[#allocation2 + $0x68] sm:$0xff] 0.0
          %237 = vst [vmem:[#allocation2 + $0x70] sm:$0xff] 0.0
          %238 = vst [vmem:[#allocation2 + $0x78] sm:$0xff] 0.0
          %239 = vst [vmem:[#allocation2 + $0x80] sm:$0xff] 0.0
          %240 = vst [vmem:[#allocation2 + $0x88] sm:$0xff] 0.0
          %241 = vst [vmem:[#allocation2 + $0x90] sm:$0xff] 0.0
          %242 = vst [vmem:[#allocation2 + $0x98] sm:$0xff] 0.0
          %243 = vst [vmem:[#allocation2 + $0xa0] sm:$0xff] 0.0
          %244 = vst [vmem:[#allocation2 + $0xa8] sm:$0xff] 0.0
          %245 = vst [vmem:[#allocation2 + $0xb0] sm:$0xff] 0.0
          %246 = vst [vmem:[#allocation2 + $0xb8] sm:$0xff] 0.0
          %247 = vst [vmem:[#allocation2 + $0xc0] sm:$0xff] 0.0
          %248 = vst [vmem:[#allocation2 + $0xc8] sm:$0xff] 0.0
          %249 = vst [vmem:[#allocation2 + $0xd0] sm:$0xff] 0.0
          %250 = vst [vmem:[#allocation2 + $0xd8] sm:$0xff] 0.0
          %251 = vst [vmem:[#allocation2 + $0xe0] sm:$0xff] 0.0
          %252 = vst [vmem:[#allocation2 + $0xe8] sm:$0xff] 0.0
          %253 = vst [vmem:[#allocation2 + $0xf0] sm:$0xff] 0.0
          %254 = vst [vmem:[#allocation2 + $0xf8] sm:$0xff] 0.0
        $region40: #{tpu_custom_call.1} parent=27 // pred_fallthru
          _
        %v255 = vld [vmem:[#allocation2] sm:$0xff]
        %v256 = vld [vmem:[#allocation2 + $0x8] sm:$0xff]
        %v257 = vld [vmem:[#allocation2 + $0x10] sm:$0xff]
        %v258 = vld [vmem:[#allocation2 + $0x18] sm:$0xff]
        %v259 = vld [vmem:[#allocation2 + $0x20] sm:$0xff]
        %v260 = vld [vmem:[#allocation2 + $0x28] sm:$0xff]
        %v261 = vld [vmem:[#allocation2 + $0x30] sm:$0xff]
        %v262 = vld [vmem:[#allocation2 + $0x38] sm:$0xff]
        %v263 = vld [vmem:[#allocation2 + $0x40] sm:$0xff]
        %v264 = vld [vmem:[#allocation2 + $0x48] sm:$0xff]
        %v265 = vld [vmem:[#allocation2 + $0x50] sm:$0xff]
        %v266 = vld [vmem:[#allocation2 + $0x58] sm:$0xff]
        %v267 = vld [vmem:[#allocation2 + $0x60] sm:$0xff]
        %v268 = vld [vmem:[#allocation2 + $0x68] sm:$0xff]
        %v269 = vld [vmem:[#allocation2 + $0x70] sm:$0xff]
        %v270 = vld [vmem:[#allocation2 + $0x78] sm:$0xff]
        %v271 = vld [vmem:[#allocation2 + $0x80] sm:$0xff]
        %v272 = vld [vmem:[#allocation2 + $0x88] sm:$0xff]
        %v273 = vld [vmem:[#allocation2 + $0x90] sm:$0xff]
        %v274 = vld [vmem:[#allocation2 + $0x98] sm:$0xff]
        %v275 = vld [vmem:[#allocation2 + $0xa0] sm:$0xff]
        %v276 = vld [vmem:[#allocation2 + $0xa8] sm:$0xff]
        %v277 = vld [vmem:[#allocation2 + $0xb0] sm:$0xff]
        %v278 = vld [vmem:[#allocation2 + $0xb8] sm:$0xff]
        %v279 = vld [vmem:[#allocation2 + $0xc0] sm:$0xff]
        %v280 = vld [vmem:[#allocation2 + $0xc8] sm:$0xff]
        %v281 = vld [vmem:[#allocation2 + $0xd0] sm:$0xff]
        %v282 = vld [vmem:[#allocation2 + $0xd8] sm:$0xff]
        %v283 = vld [vmem:[#allocation2 + $0xe0] sm:$0xff]
        %v284 = vld [vmem:[#allocation2 + $0xe8] sm:$0xff]
        %v285 = vld [vmem:[#allocation2 + $0xf0] sm:$0xff]
        %v286 = vld [vmem:[#allocation2 + $0xf8] sm:$0xff]
        %v287 = vld [vmem:[%s189] sm:$0xff]
        %v288 = vld [vmem:[%s189 + $0x8] sm:$0xff]
        %v289 = vld [vmem:[%s189 + $0x10] sm:$0xff]
        %v290 = vld [vmem:[%s189 + $0x18] sm:$0xff]
        %v291 = vld [vmem:[%s189 + $0x20] sm:$0xff]
        %v292 = vld [vmem:[%s189 + $0x28] sm:$0xff]
        %v293 = vld [vmem:[%s189 + $0x30] sm:$0xff]
        %v294 = vld [vmem:[%s189 + $0x38] sm:$0xff]
        %v295 = vld [vmem:[%s189 + $0x40] sm:$0xff]
        %v296 = vld [vmem:[%s189 + $0x48] sm:$0xff]
        %v297 = vld [vmem:[%s189 + $0x50] sm:$0xff]
        %v298 = vld [vmem:[%s189 + $0x58] sm:$0xff]
        %v299 = vld [vmem:[%s189 + $0x60] sm:$0xff]
        %v300 = vld [vmem:[%s189 + $0x68] sm:$0xff]
        %v301 = vld [vmem:[%s189 + $0x70] sm:$0xff]
        %v302 = vld [vmem:[%s189 + $0x78] sm:$0xff]
        %v303 = vld [vmem:[%s189 + $0x80] sm:$0xff]
        %v304 = vld [vmem:[%s189 + $0x88] sm:$0xff]
        %v305 = vld [vmem:[%s189 + $0x90] sm:$0xff]
        %v306 = vld [vmem:[%s189 + $0x98] sm:$0xff]
        %v307 = vld [vmem:[%s189 + $0xa0] sm:$0xff]
        %v308 = vld [vmem:[%s189 + $0xa8] sm:$0xff]
        %v309 = vld [vmem:[%s189 + $0xb0] sm:$0xff]
        %v310 = vld [vmem:[%s189 + $0xb8] sm:$0xff]
        %v311 = vld [vmem:[%s189 + $0xc0] sm:$0xff]
        %v312 = vld [vmem:[%s189 + $0xc8] sm:$0xff]
        %v313 = vld [vmem:[%s189 + $0xd0] sm:$0xff]
        %v314 = vld [vmem:[%s189 + $0xd8] sm:$0xff]
        %v315 = vld [vmem:[%s189 + $0xe0] sm:$0xff]
        %v316 = vld [vmem:[%s189 + $0xe8] sm:$0xff]
        %v317 = vld [vmem:[%s189 + $0xf0] sm:$0xff]
        %v318 = vld [vmem:[%s189 + $0xf8] sm:$0xff]
        %v319 = vld [vmem:[%s189 + $0x100] sm:$0xff]
        %v320 = vld [vmem:[%s189 + $0x108] sm:$0xff]
        %v321 = vld [vmem:[%s189 + $0x110] sm:$0xff]
        %v322 = vld [vmem:[%s189 + $0x118] sm:$0xff]
        %v323 = vld [vmem:[%s189 + $0x120] sm:$0xff]
        %v324 = vld [vmem:[%s189 + $0x128] sm:$0xff]
        %v325 = vld [vmem:[%s189 + $0x130] sm:$0xff]
        %v326 = vld [vmem:[%s189 + $0x138] sm:$0xff]
        %v327 = vld [vmem:[%s189 + $0x140] sm:$0xff]
        %v328 = vld [vmem:[%s189 + $0x148] sm:$0xff]
        %v329 = vld [vmem:[%s189 + $0x150] sm:$0xff]
        %v330 = vld [vmem:[%s189 + $0x158] sm:$0xff]
        %v331 = vld [vmem:[%s189 + $0x160] sm:$0xff]
        %v332 = vld [vmem:[%s189 + $0x168] sm:$0xff]
        %v333 = vld [vmem:[%s189 + $0x170] sm:$0xff]
        %v334 = vld [vmem:[%s189 + $0x178] sm:$0xff]
        %v335 = vld [vmem:[%s189 + $0x180] sm:$0xff]
        %v336 = vld [vmem:[%s189 + $0x188] sm:$0xff]
        %v337 = vld [vmem:[%s189 + $0x190] sm:$0xff]
        %v338 = vld [vmem:[%s189 + $0x198] sm:$0xff]
        %v339 = vld [vmem:[%s189 + $0x1a0] sm:$0xff]
        %v340 = vld [vmem:[%s189 + $0x1a8] sm:$0xff]
        %v341 = vld [vmem:[%s189 + $0x1b0] sm:$0xff]
        %v342 = vld [vmem:[%s189 + $0x1b8] sm:$0xff]
        %v343 = vld [vmem:[%s189 + $0x1c0] sm:$0xff]
        %v344 = vld [vmem:[%s189 + $0x1c8] sm:$0xff]
        %v345 = vld [vmem:[%s189 + $0x1d0] sm:$0xff]
        %v346 = vld [vmem:[%s189 + $0x1d8] sm:$0xff]
        %v347 = vld [vmem:[%s189 + $0x1e0] sm:$0xff]
        %v348 = vld [vmem:[%s189 + $0x1e8] sm:$0xff]
        %v349 = vld [vmem:[%s189 + $0x1f0] sm:$0xff]
        %v350 = vld [vmem:[%s189 + $0x1f8] sm:$0xff]
        %v351 = vld [vmem:[#allocation6] sm:$0xf]
        %v352 = vld [vmem:[#allocation6 + $0x4] sm:$0xf]
        %v353 = vld [vmem:[#allocation6 + $0x8] sm:$0xf]
        %v354 = vld [vmem:[#allocation6 + $0xc] sm:$0xf]
        %v355 = vld [vmem:[#allocation6 + $0x10] sm:$0xf]
        %v356 = vld [vmem:[#allocation6 + $0x14] sm:$0xf]
        %v357 = vld [vmem:[#allocation6 + $0x18] sm:$0xf]
        %v358 = vld [vmem:[#allocation6 + $0x1c] sm:$0xf]
        %v359 = vld [vmem:[#allocation6 + $0x20] sm:$0xf]
        %v360 = vld [vmem:[#allocation6 + $0x24] sm:$0xf]
        %v361 = vld [vmem:[#allocation6 + $0x28] sm:$0xf]
        %v362 = vld [vmem:[#allocation6 + $0x2c] sm:$0xf]
        %v363 = vld [vmem:[#allocation6 + $0x30] sm:$0xf]
        %v364 = vld [vmem:[#allocation6 + $0x34] sm:$0xf]
        %v365 = vld [vmem:[#allocation6 + $0x38] sm:$0xf]
        %v366 = vld [vmem:[#allocation6 + $0x3c] sm:$0xf]
        %v367 = vld [vmem:[#allocation6 + $0x40] sm:$0xf]
        %v368 = vld [vmem:[#allocation6 + $0x44] sm:$0xf]
        %v369 = vld [vmem:[#allocation6 + $0x48] sm:$0xf]
        %v370 = vld [vmem:[#allocation6 + $0x4c] sm:$0xf]
        %v371 = vld [vmem:[#allocation6 + $0x50] sm:$0xf]
        %v372 = vld [vmem:[#allocation6 + $0x54] sm:$0xf]
        %v373 = vld [vmem:[#allocation6 + $0x58] sm:$0xf]
        %v374 = vld [vmem:[#allocation6 + $0x5c] sm:$0xf]
        %v375 = vld [vmem:[#allocation6 + $0x60] sm:$0xf]
        %v376 = vld [vmem:[#allocation6 + $0x64] sm:$0xf]
        %v377 = vld [vmem:[#allocation6 + $0x68] sm:$0xf]
        %v378 = vld [vmem:[#allocation6 + $0x6c] sm:$0xf]
        %v379 = vld [vmem:[#allocation6 + $0x70] sm:$0xf]
        %v380 = vld [vmem:[#allocation6 + $0x74] sm:$0xf]
        %v381 = vld [vmem:[#allocation6 + $0x78] sm:$0xf]
        %v382 = vld [vmem:[#allocation6 + $0x7c] sm:$0xf]
        %v383 = vld [vmem:[#allocation6 + $0x80] sm:$0xf]
        %v384 = vld [vmem:[#allocation6 + $0x84] sm:$0xf]
        %v385 = vld [vmem:[#allocation6 + $0x88] sm:$0xf]
        %v386 = vld [vmem:[#allocation6 + $0x8c] sm:$0xf]
        %v387 = vld [vmem:[#allocation6 + $0x90] sm:$0xf]
        %v388 = vld [vmem:[#allocation6 + $0x94] sm:$0xf]
        %v389 = vld [vmem:[#allocation6 + $0x98] sm:$0xf]
        %v390 = vld [vmem:[#allocation6 + $0x9c] sm:$0xf]
        %v391 = vld [vmem:[#allocation6 + $0xa0] sm:$0xf]
        %v392 = vld [vmem:[#allocation6 + $0xa4] sm:$0xf]
        %v393 = vld [vmem:[#allocation6 + $0xa8] sm:$0xf]
        %v394 = vld [vmem:[#allocation6 + $0xac] sm:$0xf]
        %v395 = vld [vmem:[#allocation6 + $0xb0] sm:$0xf]
        %v396 = vld [vmem:[#allocation6 + $0xb4] sm:$0xf]
        %v397 = vld [vmem:[#allocation6 + $0xb8] sm:$0xf]
        %v398 = vld [vmem:[#allocation6 + $0xbc] sm:$0xf]
        %v399 = vld [vmem:[#allocation6 + $0xc0] sm:$0xf]
        %v400 = vld [vmem:[#allocation6 + $0xc4] sm:$0xf]
        %v401 = vld [vmem:[#allocation6 + $0xc8] sm:$0xf]
        %v402 = vld [vmem:[#allocation6 + $0xcc] sm:$0xf]
        %v403 = vld [vmem:[#allocation6 + $0xd0] sm:$0xf]
        %v404 = vld [vmem:[#allocation6 + $0xd4] sm:$0xf]
        %v405 = vld [vmem:[#allocation6 + $0xd8] sm:$0xf]
        %v406 = vld [vmem:[#allocation6 + $0xdc] sm:$0xf]
        %v407 = vld [vmem:[#allocation6 + $0xe0] sm:$0xf]
        %v408 = vld [vmem:[#allocation6 + $0xe4] sm:$0xf]
        %v409 = vld [vmem:[#allocation6 + $0xe8] sm:$0xf]
        %v410 = vld [vmem:[#allocation6 + $0xec] sm:$0xf]
        %v411 = vld [vmem:[#allocation6 + $0xf0] sm:$0xf]
        %v412 = vld [vmem:[#allocation6 + $0xf4] sm:$0xf]
        %v413 = vld [vmem:[#allocation6 + $0xf8] sm:$0xf]
        %v414 = vld [vmem:[#allocation6 + $0xfc] sm:$0xf]
        %v479 = vunpack.c.l.b16 %v287
        %v480 = vunpack.c.h.b16 %v287
        %v481 = vunpack.c.l.b16 %v288
        %v482 = vunpack.c.h.b16 %v288
        %v483 = vunpack.c.l.b16 %v289
        %v484 = vunpack.c.h.b16 %v289
        %v485 = vunpack.c.l.b16 %v290
        %v486 = vunpack.c.h.b16 %v290
        %v487 = vunpack.c.l.b16 %v291
        %v488 = vunpack.c.h.b16 %v291
        %v489 = vunpack.c.l.b16 %v292
        %v490 = vunpack.c.h.b16 %v292
        %v491 = vunpack.c.l.b16 %v293
        %v492 = vunpack.c.h.b16 %v293
        %v493 = vunpack.c.l.b16 %v294
        %v494 = vunpack.c.h.b16 %v294
        %v495 = vunpack.c.l.b16 %v295
        %v496 = vunpack.c.h.b16 %v295
        %v497 = vunpack.c.l.b16 %v296
        %v498 = vunpack.c.h.b16 %v296
        %v499 = vunpack.c.l.b16 %v297
        %v500 = vunpack.c.h.b16 %v297
        %v501 = vunpack.c.l.b16 %v298
        %v502 = vunpack.c.h.b16 %v298
        %v503 = vunpack.c.l.b16 %v299
        %v504 = vunpack.c.h.b16 %v299
        %v505 = vunpack.c.l.b16 %v300
        %v506 = vunpack.c.h.b16 %v300
        %v507 = vunpack.c.l.b16 %v301
        %v508 = vunpack.c.h.b16 %v301
        %v509 = vunpack.c.l.b16 %v302
        %v510 = vunpack.c.h.b16 %v302
        %v511 = vunpack.c.l.b16 %v303
        %v512 = vunpack.c.h.b16 %v303
        %v513 = vunpack.c.l.b16 %v304
        %v514 = vunpack.c.h.b16 %v304
        %v515 = vunpack.c.l.b16 %v305
        %v516 = vunpack.c.h.b16 %v305
        %v517 = vunpack.c.l.b16 %v306
        %v518 = vunpack.c.h.b16 %v306
        %v519 = vunpack.c.l.b16 %v307
        %v520 = vunpack.c.h.b16 %v307
        %v521 = vunpack.c.l.b16 %v308
        %v522 = vunpack.c.h.b16 %v308
        %v523 = vunpack.c.l.b16 %v309
        %v524 = vunpack.c.h.b16 %v309
        %v525 = vunpack.c.l.b16 %v310
        %v526 = vunpack.c.h.b16 %v310
        %v527 = vunpack.c.l.b16 %v311
        %v528 = vunpack.c.h.b16 %v311
        %v529 = vunpack.c.l.b16 %v312
        %v530 = vunpack.c.h.b16 %v312
        %v531 = vunpack.c.l.b16 %v313
        %v532 = vunpack.c.h.b16 %v313
        %v533 = vunpack.c.l.b16 %v314
        %v534 = vunpack.c.h.b16 %v314
        %v535 = vunpack.c.l.b16 %v315
        %v536 = vunpack.c.h.b16 %v315
        %v537 = vunpack.c.l.b16 %v316
        %v538 = vunpack.c.h.b16 %v316
        %v539 = vunpack.c.l.b16 %v317
        %v540 = vunpack.c.h.b16 %v317
        %v541 = vunpack.c.l.b16 %v318
        %v542 = vunpack.c.h.b16 %v318
        %v543 = vunpack.c.l.b16 %v319
        %v544 = vunpack.c.h.b16 %v319
        %v545 = vunpack.c.l.b16 %v320
        %v546 = vunpack.c.h.b16 %v320
        %v547 = vunpack.c.l.b16 %v321
        %v548 = vunpack.c.h.b16 %v321
        %v549 = vunpack.c.l.b16 %v322
        %v550 = vunpack.c.h.b16 %v322
        %v551 = vunpack.c.l.b16 %v323
        %v552 = vunpack.c.h.b16 %v323
        %v553 = vunpack.c.l.b16 %v324
        %v554 = vunpack.c.h.b16 %v324
        %v555 = vunpack.c.l.b16 %v325
        %v556 = vunpack.c.h.b16 %v325
        %v557 = vunpack.c.l.b16 %v326
        %v558 = vunpack.c.h.b16 %v326
        %v559 = vunpack.c.l.b16 %v327
        %v560 = vunpack.c.h.b16 %v327
        %v561 = vunpack.c.l.b16 %v328
        %v562 = vunpack.c.h.b16 %v328
        %v563 = vunpack.c.l.b16 %v329
        %v564 = vunpack.c.h.b16 %v329
        %v565 = vunpack.c.l.b16 %v330
        %v566 = vunpack.c.h.b16 %v330
        %v567 = vunpack.c.l.b16 %v331
        %v568 = vunpack.c.h.b16 %v331
        %v569 = vunpack.c.l.b16 %v332
        %v570 = vunpack.c.h.b16 %v332
        %v571 = vunpack.c.l.b16 %v333
        %v572 = vunpack.c.h.b16 %v333
        %v573 = vunpack.c.l.b16 %v334
        %v574 = vunpack.c.h.b16 %v334
        %v575 = vunpack.c.l.b16 %v335
        %v576 = vunpack.c.h.b16 %v335
        %v577 = vunpack.c.l.b16 %v336
        %v578 = vunpack.c.h.b16 %v336
        %v579 = vunpack.c.l.b16 %v337
        %v580 = vunpack.c.h.b16 %v337
        %v581 = vunpack.c.l.b16 %v338
        %v582 = vunpack.c.h.b16 %v338
        %v583 = vunpack.c.l.b16 %v339
        %v584 = vunpack.c.h.b16 %v339
        %v585 = vunpack.c.l.b16 %v340
        %v586 = vunpack.c.h.b16 %v340
        %v587 = vunpack.c.l.b16 %v341
        %v588 = vunpack.c.h.b16 %v341
        %v589 = vunpack.c.l.b16 %v342
        %v590 = vunpack.c.h.b16 %v342
        %v591 = vunpack.c.l.b16 %v343
        %v592 = vunpack.c.h.b16 %v343
        %v593 = vunpack.c.l.b16 %v344
        %v594 = vunpack.c.h.b16 %v344
        %v595 = vunpack.c.l.b16 %v345
        %v596 = vunpack.c.h.b16 %v345
        %v597 = vunpack.c.l.b16 %v346
        %v598 = vunpack.c.h.b16 %v346
        %v599 = vunpack.c.l.b16 %v347
        %v600 = vunpack.c.h.b16 %v347
        %v601 = vunpack.c.l.b16 %v348
        %v602 = vunpack.c.h.b16 %v348
        %v603 = vunpack.c.l.b16 %v349
        %v604 = vunpack.c.h.b16 %v349
        %v605 = vunpack.c.l.b16 %v350
        %v606 = vunpack.c.h.b16 %v350
        %v607 = vpack.c.b16 %v483, %v479
        %v608 = vpack.c.b16 %v484, %v480
        %v609 = vpack.c.b16 %v485, %v481
        %v610 = vpack.c.b16 %v486, %v482
        %v611 = vpack.c.b16 %v491, %v487
        %v612 = vpack.c.b16 %v492, %v488
        %v613 = vpack.c.b16 %v493, %v489
        %v614 = vpack.c.b16 %v494, %v490
        %v615 = vpack.c.b16 %v499, %v495
        %v616 = vpack.c.b16 %v500, %v496
        %v617 = vpack.c.b16 %v501, %v497
        %v618 = vpack.c.b16 %v502, %v498
        %v619 = vpack.c.b16 %v507, %v503
        %v620 = vpack.c.b16 %v508, %v504
        %v621 = vpack.c.b16 %v509, %v505
        %v622 = vpack.c.b16 %v510, %v506
        %v623 = vpack.c.b16 %v515, %v511
        %v624 = vpack.c.b16 %v516, %v512
        %v625 = vpack.c.b16 %v517, %v513
        %v626 = vpack.c.b16 %v518, %v514
        %v627 = vpack.c.b16 %v523, %v519
        %v628 = vpack.c.b16 %v524, %v520
        %v629 = vpack.c.b16 %v525, %v521
        %v630 = vpack.c.b16 %v526, %v522
        %v631 = vpack.c.b16 %v531, %v527
        %v632 = vpack.c.b16 %v532, %v528
        %v633 = vpack.c.b16 %v533, %v529
        %v634 = vpack.c.b16 %v534, %v530
        %v635 = vpack.c.b16 %v539, %v535
        %v636 = vpack.c.b16 %v540, %v536
        %v637 = vpack.c.b16 %v541, %v537
        %v638 = vpack.c.b16 %v542, %v538
        %v639 = vpack.c.b16 %v547, %v543
        %v640 = vpack.c.b16 %v548, %v544
        %v641 = vpack.c.b16 %v549, %v545
        %v642 = vpack.c.b16 %v550, %v546
        %v643 = vpack.c.b16 %v555, %v551
        %v644 = vpack.c.b16 %v556, %v552
        %v645 = vpack.c.b16 %v557, %v553
        %v646 = vpack.c.b16 %v558, %v554
        %v647 = vpack.c.b16 %v563, %v559
        %v648 = vpack.c.b16 %v564, %v560
        %v649 = vpack.c.b16 %v565, %v561
        %v650 = vpack.c.b16 %v566, %v562
        %v651 = vpack.c.b16 %v571, %v567
        %v652 = vpack.c.b16 %v572, %v568
        %v653 = vpack.c.b16 %v573, %v569
        %v654 = vpack.c.b16 %v574, %v570
        %v655 = vpack.c.b16 %v579, %v575
        %v656 = vpack.c.b16 %v580, %v576
        %v657 = vpack.c.b16 %v581, %v577
        %v658 = vpack.c.b16 %v582, %v578
        %v659 = vpack.c.b16 %v587, %v583
        %v660 = vpack.c.b16 %v588, %v584
        %v661 = vpack.c.b16 %v589, %v585
        %v662 = vpack.c.b16 %v590, %v586
        %v663 = vpack.c.b16 %v595, %v591
        %v664 = vpack.c.b16 %v596, %v592
        %v665 = vpack.c.b16 %v597, %v593
        %v666 = vpack.c.b16 %v598, %v594
        %v667 = vpack.c.b16 %v603, %v599
        %v668 = vpack.c.b16 %v604, %v600
        %v669 = vpack.c.b16 %v605, %v601
        %v670 = vpack.c.b16 %v606, %v602
        %v799 = vunpack.c.l.b16 %v351
        %v800 = vunpack.c.l.b16 %v352
        %v801 = vunpack.c.l.b16 %v353
        %v802 = vunpack.c.l.b16 %v354
        %v803 = vunpack.c.l.b16 %v355
        %v804 = vunpack.c.l.b16 %v356
        %v805 = vunpack.c.l.b16 %v357
        %v806 = vunpack.c.l.b16 %v358
        %v807 = vunpack.c.l.b16 %v359
        %v808 = vunpack.c.l.b16 %v360
        %v809 = vunpack.c.l.b16 %v361
        %v810 = vunpack.c.l.b16 %v362
        %v811 = vunpack.c.l.b16 %v363
        %v812 = vunpack.c.l.b16 %v364
        %v813 = vunpack.c.l.b16 %v365
        %v814 = vunpack.c.l.b16 %v366
        %v815 = vunpack.c.l.b16 %v367
        %v816 = vunpack.c.l.b16 %v368
        %v817 = vunpack.c.l.b16 %v369
        %v818 = vunpack.c.l.b16 %v370
        %v819 = vunpack.c.l.b16 %v371
        %v820 = vunpack.c.l.b16 %v372
        %v821 = vunpack.c.l.b16 %v373
        %v822 = vunpack.c.l.b16 %v374
        %v823 = vunpack.c.l.b16 %v375
        %v824 = vunpack.c.l.b16 %v376
        %v825 = vunpack.c.l.b16 %v377
        %v826 = vunpack.c.l.b16 %v378
        %v827 = vunpack.c.l.b16 %v379
        %v828 = vunpack.c.l.b16 %v380
        %v829 = vunpack.c.l.b16 %v381
        %v830 = vunpack.c.l.b16 %v382
        %v831 = vunpack.c.l.b16 %v383
        %v832 = vunpack.c.l.b16 %v384
        %v833 = vunpack.c.l.b16 %v385
        %v834 = vunpack.c.l.b16 %v386
        %v835 = vunpack.c.l.b16 %v387
        %v836 = vunpack.c.l.b16 %v388
        %v837 = vunpack.c.l.b16 %v389
        %v838 = vunpack.c.l.b16 %v390
        %v839 = vunpack.c.l.b16 %v391
        %v840 = vunpack.c.l.b16 %v392
        %v841 = vunpack.c.l.b16 %v393
        %v842 = vunpack.c.l.b16 %v394
        %v843 = vunpack.c.l.b16 %v395
        %v844 = vunpack.c.l.b16 %v396
        %v845 = vunpack.c.l.b16 %v397
        %v846 = vunpack.c.l.b16 %v398
        %v847 = vunpack.c.l.b16 %v399
        %v848 = vunpack.c.l.b16 %v400
        %v849 = vunpack.c.l.b16 %v401
        %v850 = vunpack.c.l.b16 %v402
        %v851 = vunpack.c.l.b16 %v403
        %v852 = vunpack.c.l.b16 %v404
        %v853 = vunpack.c.l.b16 %v405
        %v854 = vunpack.c.l.b16 %v406
        %v855 = vunpack.c.l.b16 %v407
        %v856 = vunpack.c.l.b16 %v408
        %v857 = vunpack.c.l.b16 %v409
        %v858 = vunpack.c.l.b16 %v410
        %v859 = vunpack.c.l.b16 %v411
        %v860 = vunpack.c.l.b16 %v412
        %v861 = vunpack.c.l.b16 %v413
        %v862 = vunpack.c.l.b16 %v414
        %v863 = vpack.c.b16 %v800, %v799
        %v864 = vpack.c.b16 %v802, %v801
        %v865 = vpack.c.b16 %v804, %v803
        %v866 = vpack.c.b16 %v806, %v805
        %v867 = vpack.c.b16 %v808, %v807
        %v868 = vpack.c.b16 %v810, %v809
        %v869 = vpack.c.b16 %v812, %v811
        %v870 = vpack.c.b16 %v814, %v813
        %v871 = vpack.c.b16 %v816, %v815
        %v872 = vpack.c.b16 %v818, %v817
        %v873 = vpack.c.b16 %v820, %v819
        %v874 = vpack.c.b16 %v822, %v821
        %v875 = vpack.c.b16 %v824, %v823
        %v876 = vpack.c.b16 %v826, %v825
        %v877 = vpack.c.b16 %v828, %v827
        %v878 = vpack.c.b16 %v830, %v829
        %v879 = vpack.c.b16 %v832, %v831
        %v880 = vpack.c.b16 %v834, %v833
        %v881 = vpack.c.b16 %v836, %v835
        %v882 = vpack.c.b16 %v838, %v837
        %v883 = vpack.c.b16 %v840, %v839
        %v884 = vpack.c.b16 %v842, %v841
        %v885 = vpack.c.b16 %v844, %v843
        %v886 = vpack.c.b16 %v846, %v845
        %v887 = vpack.c.b16 %v848, %v847
        %v888 = vpack.c.b16 %v850, %v849
        %v889 = vpack.c.b16 %v852, %v851
        %v890 = vpack.c.b16 %v854, %v853
        %v891 = vpack.c.b16 %v856, %v855
        %v892 = vpack.c.b16 %v858, %v857
        %v893 = vpack.c.b16 %v860, %v859
        %v894 = vpack.c.b16 %v862, %v861
        %927 = vmatprep.subr.bf16.mxu0 0
        %928 = vmatpush1.bf16.msra.mxu0 %v863
        %929 = vmatprep.subr.bf16.mxu0 0
        %930 = vmatpush1.bf16.msra.mxu0 %v864
        %931 = vmatprep.subr.bf16.mxu0 0
        %932 = vmatpush1.bf16.msra.mxu0 %v865
        %933 = vmatprep.subr.bf16.mxu0 0
        %934 = vmatpush1.bf16.msra.mxu0 %v866
        %935 = vmatprep.subr.bf16.mxu0 0
        %936 = vmatpush1.bf16.msra.mxu0 %v867
        %937 = vmatprep.subr.bf16.mxu0 0
        %938 = vmatpush1.bf16.msra.mxu0 %v868
        %939 = vmatprep.subr.bf16.mxu0 0
        %940 = vmatpush1.bf16.msra.mxu0 %v869
        %941 = vmatprep.subr.bf16.mxu0 0
        %942 = vmatpush1.bf16.msra.mxu0 %v870
        %943 = vmatprep.subr.bf16.mxu0 0
        %944 = vmatpush1.bf16.msra.mxu0 %v871
        %945 = vmatprep.subr.bf16.mxu0 0
        %946 = vmatpush1.bf16.msra.mxu0 %v872
        %947 = vmatprep.subr.bf16.mxu0 0
        %948 = vmatpush1.bf16.msra.mxu0 %v873
        %949 = vmatprep.subr.bf16.mxu0 0
        %950 = vmatpush1.bf16.msra.mxu0 %v874
        %951 = vmatprep.subr.bf16.mxu0 0
        %952 = vmatpush1.bf16.msra.mxu0 %v875
        %953 = vmatprep.subr.bf16.mxu0 0
        %954 = vmatpush1.bf16.msra.mxu0 %v876
        %955 = vmatprep.subr.bf16.mxu0 0
        %956 = vmatpush1.bf16.msra.mxu0 %v877
        %957 = vmatprep.subr.bf16.mxu0 0
        %958 = vmatpush1.bf16.msra.mxu0 %v878
        %959 = vmatprep.mubr.bf16.mxu0 %v608
        %960 = vmatmul.mubr.bf16.gmra.mrb[0].mxu0 %v607
        %v961 = vpop.f32.mrb[0].mxu0
        %v962 = vadd.f32 0.0, %v961
        %v963 = vpop.f32.mrb[0].mxu0
        %v964 = vpop.f32.mrb[0].mxu0
        %v965 = vadd.f32 0.0, %v964
        %v966 = vpop.f32.mrb[0].mxu0
        %967 = vmatprep.mubr.bf16.mxu0 %v612
        %968 = vmatmul.mubr.bf16.gmra.mrb[0].mxu0 %v611
        %v969 = vpop.f32.mrb[0].mxu0
        %v970 = vadd.f32 0.0, %v969
        %v971 = vpop.f32.mrb[0].mxu0
        %v972 = vpop.f32.mrb[0].mxu0
        %v973 = vadd.f32 0.0, %v972
        %v974 = vpop.f32.mrb[0].mxu0
        %975 = vmatprep.mubr.bf16.mxu0 %v616
        %976 = vmatmul.mubr.bf16.gmra.mrb[0].mxu0 %v615
        %v977 = vpop.f32.mrb[0].mxu0
        %v978 = vadd.f32 0.0, %v977
        %v979 = vpop.f32.mrb[0].mxu0
        %v980 = vpop.f32.mrb[0].mxu0
        %v981 = vadd.f32 0.0, %v980
        %v982 = vpop.f32.mrb[0].mxu0
        %983 = vmatprep.mubr.bf16.mxu0 %v620
        %984 = vmatmul.mubr.bf16.gmra.mrb[0].mxu0 %v619
        %v985 = vpop.f32.mrb[0].mxu0
        %v986 = vadd.f32 0.0, %v985
        %v987 = vpop.f32.mrb[0].mxu0
        %v988 = vpop.f32.mrb[0].mxu0
        %v989 = vadd.f32 0.0, %v988
        %v990 = vpop.f32.mrb[0].mxu0
        %991 = vmatprep.mubr.bf16.mxu0 %v624
        %992 = vmatmul.mubr.bf16.gmra.mrb[0].mxu0 %v623
        %v993 = vpop.f32.mrb[0].mxu0
        %v994 = vadd.f32 0.0, %v993
        %v995 = vpop.f32.mrb[0].mxu0
        %v996 = vpop.f32.mrb[0].mxu0
        %v997 = vadd.f32 0.0, %v996
        %v998 = vpop.f32.mrb[0].mxu0
        %999 = vmatprep.mubr.bf16.mxu0 %v628
        %1000 = vmatmul.mubr.bf16.gmra.mrb[0].mxu0 %v627
        %v1001 = vpop.f32.mrb[0].mxu0
        %v1002 = vadd.f32 0.0, %v1001
        %v1003 = vpop.f32.mrb[0].mxu0
        %v1004 = vpop.f32.mrb[0].mxu0
        %v1005 = vadd.f32 0.0, %v1004
        %v1006 = vpop.f32.mrb[0].mxu0
        %1007 = vmatprep.mubr.bf16.mxu0 %v632
        %1008 = vmatmul.mubr.bf16.gmra.mrb[0].mxu0 %v631
        %v1009 = vpop.f32.mrb[0].mxu0
        %v1010 = vadd.f32 0.0, %v1009
        %v1011 = vpop.f32.mrb[0].mxu0
        %v1012 = vpop.f32.mrb[0].mxu0
        %v1013 = vadd.f32 0.0, %v1012
        %v1014 = vpop.f32.mrb[0].mxu0
        %1015 = vmatprep.mubr.bf16.mxu0 %v636
        %1016 = vmatmul.mubr.bf16.gmra.mrb[0].mxu0 %v635
        %v1017 = vpop.f32.mrb[0].mxu0
        %v1018 = vadd.f32 0.0, %v1017
        %v1019 = vpop.f32.mrb[0].mxu0
        %v1020 = vpop.f32.mrb[0].mxu0
        %v1021 = vadd.f32 0.0, %v1020
        %v1022 = vpop.f32.mrb[0].mxu0
        %1023 = vmatprep.mubr.bf16.mxu0 %v640
        %1024 = vmatmul.mubr.bf16.gmra.mrb[0].mxu0 %v639
        %v1025 = vpop.f32.mrb[0].mxu0
        %v1026 = vadd.f32 0.0, %v1025
        %v1027 = vpop.f32.mrb[0].mxu0
        %v1028 = vpop.f32.mrb[0].mxu0
        %v1029 = vadd.f32 0.0, %v1028
        %v1030 = vpop.f32.mrb[0].mxu0
        %1031 = vmatprep.mubr.bf16.mxu0 %v644
        %1032 = vmatmul.mubr.bf16.gmra.mrb[0].mxu0 %v643
        %v1033 = vpop.f32.mrb[0].mxu0
        %v1034 = vadd.f32 0.0, %v1033
        %v1035 = vpop.f32.mrb[0].mxu0
        %v1036 = vpop.f32.mrb[0].mxu0
        %v1037 = vadd.f32 0.0, %v1036
        %v1038 = vpop.f32.mrb[0].mxu0
        %1039 = vmatprep.mubr.bf16.mxu0 %v648
        %1040 = vmatmul.mubr.bf16.gmra.mrb[0].mxu0 %v647
        %v1041 = vpop.f32.mrb[0].mxu0
        %v1042 = vadd.f32 0.0, %v1041
        %v1043 = vpop.f32.mrb[0].mxu0
        %v1044 = vpop.f32.mrb[0].mxu0
        %v1045 = vadd.f32 0.0, %v1044
        %v1046 = vpop.f32.mrb[0].mxu0
        %1047 = vmatprep.mubr.bf16.mxu0 %v652
        %1048 = vmatmul.mubr.bf16.gmra.mrb[0].mxu0 %v651
        %v1049 = vpop.f32.mrb[0].mxu0
        %v1050 = vadd.f32 0.0, %v1049
        %v1051 = vpop.f32.mrb[0].mxu0
        %v1052 = vpop.f32.mrb[0].mxu0
        %v1053 = vadd.f32 0.0, %v1052
        %v1054 = vpop.f32.mrb[0].mxu0
        %1055 = vmatprep.mubr.bf16.mxu0 %v656
        %1056 = vmatmul.mubr.bf16.gmra.mrb[0].mxu0 %v655
        %v1057 = vpop.f32.mrb[0].mxu0
        %v1058 = vadd.f32 0.0, %v1057
        %v1059 = vpop.f32.mrb[0].mxu0
        %v1060 = vpop.f32.mrb[0].mxu0
        %v1061 = vadd.f32 0.0, %v1060
        %v1062 = vpop.f32.mrb[0].mxu0
        %1063 = vmatprep.mubr.bf16.mxu0 %v660
        %1064 = vmatmul.mubr.bf16.gmra.mrb[0].mxu0 %v659
        %v1065 = vpop.f32.mrb[0].mxu0
        %v1066 = vadd.f32 0.0, %v1065
        %v1067 = vpop.f32.mrb[0].mxu0
        %v1068 = vpop.f32.mrb[0].mxu0
        %v1069 = vadd.f32 0.0, %v1068
        %v1070 = vpop.f32.mrb[0].mxu0
        %1071 = vmatprep.mubr.bf16.mxu0 %v664
        %1072 = vmatmul.mubr.bf16.gmra.mrb[0].mxu0 %v663
        %v1073 = vpop.f32.mrb[0].mxu0
        %v1074 = vadd.f32 0.0, %v1073
        %v1075 = vpop.f32.mrb[0].mxu0
        %v1076 = vpop.f32.mrb[0].mxu0
        %v1077 = vadd.f32 0.0, %v1076
        %v1078 = vpop.f32.mrb[0].mxu0
        %1079 = vmatprep.mubr.bf16.mxu0 %v668
        %1080 = vmatmul.mubr.bf16.gmra.mrb[0].mxu0 %v667
        %v1081 = vpop.f32.mrb[0].mxu0
        %v1082 = vadd.f32 0.0, %v1081
        %v1083 = vpop.f32.mrb[0].mxu0
        %v1084 = vpop.f32.mrb[0].mxu0
        %v1085 = vadd.f32 0.0, %v1084
        %v1086 = vpop.f32.mrb[0].mxu0
        %1087 = vdwg.mxu0
        %1088 = vmatprep.subr.bf16.mxu0 0
        %1089 = vmatpush1.bf16.msra.mxu0 %v879
        %1090 = vmatprep.subr.bf16.mxu0 0
        %1091 = vmatpush1.bf16.msra.mxu0 %v880
        %1092 = vmatprep.subr.bf16.mxu0 0
        %1093 = vmatpush1.bf16.msra.mxu0 %v881
        %1094 = vmatprep.subr.bf16.mxu0 0
        %1095 = vmatpush1.bf16.msra.mxu0 %v882
        %1096 = vmatprep.subr.bf16.mxu0 0
        %1097 = vmatpush1.bf16.msra.mxu0 %v883
        %1098 = vmatprep.subr.bf16.mxu0 0
        %1099 = vmatpush1.bf16.msra.mxu0 %v884
        %1100 = vmatprep.subr.bf16.mxu0 0
        %1101 = vmatpush1.bf16.msra.mxu0 %v885
        %1102 = vmatprep.subr.bf16.mxu0 0
        %1103 = vmatpush1.bf16.msra.mxu0 %v886
        %1104 = vmatprep.subr.bf16.mxu0 0
        %1105 = vmatpush1.bf16.msra.mxu0 %v887
        %1106 = vmatprep.subr.bf16.mxu0 0
        %1107 = vmatpush1.bf16.msra.mxu0 %v888
        %1108 = vmatprep.subr.bf16.mxu0 0
        %1109 = vmatpush1.bf16.msra.mxu0 %v889
        %1110 = vmatprep.subr.bf16.mxu0 0
        %1111 = vmatpush1.bf16.msra.mxu0 %v890
        %1112 = vmatprep.subr.bf16.mxu0 0
        %1113 = vmatpush1.bf16.msra.mxu0 %v891
        %1114 = vmatprep.subr.bf16.mxu0 0
        %1115 = vmatpush1.bf16.msra.mxu0 %v892
        %1116 = vmatprep.subr.bf16.mxu0 0
        %1117 = vmatpush1.bf16.msra.mxu0 %v893
        %1118 = vmatprep.subr.bf16.mxu0 0
        %1119 = vmatpush1.bf16.msra.mxu0 %v894
        %1120 = vmatprep.mubr.bf16.mxu0 %v610
        %1121 = vmatmul.mubr.bf16.gmra.mrb[0].mxu0 %v609
        %v1122 = vpop.f32.mrb[0].mxu0
        %v1123 = vadd.f32 %v962, %v1122
        %v1124 = vpop.f32.mrb[0].mxu0
        %v1125 = vpop.f32.mrb[0].mxu0
        %v1126 = vadd.f32 %v965, %v1125
        %v1127 = vpop.f32.mrb[0].mxu0
        %1128 = vmatprep.mubr.bf16.mxu0 %v614
        %1129 = vmatmul.mubr.bf16.gmra.mrb[0].mxu0 %v613
        %v1130 = vpop.f32.mrb[0].mxu0
        %v1131 = vadd.f32 %v970, %v1130
        %v1132 = vpop.f32.mrb[0].mxu0
        %v1133 = vpop.f32.mrb[0].mxu0
        %v1134 = vadd.f32 %v973, %v1133
        %v1135 = vpop.f32.mrb[0].mxu0
        %1136 = vmatprep.mubr.bf16.mxu0 %v618
        %1137 = vmatmul.mubr.bf16.gmra.mrb[0].mxu0 %v617
        %v1138 = vpop.f32.mrb[0].mxu0
        %v1139 = vadd.f32 %v978, %v1138
        %v1140 = vpop.f32.mrb[0].mxu0
        %v1141 = vpop.f32.mrb[0].mxu0
        %v1142 = vadd.f32 %v981, %v1141
        %v1143 = vpop.f32.mrb[0].mxu0
        %1144 = vmatprep.mubr.bf16.mxu0 %v622
        %1145 = vmatmul.mubr.bf16.gmra.mrb[0].mxu0 %v621
        %v1146 = vpop.f32.mrb[0].mxu0
        %v1147 = vadd.f32 %v986, %v1146
        %v1148 = vpop.f32.mrb[0].mxu0
        %v1149 = vpop.f32.mrb[0].mxu0
        %v1150 = vadd.f32 %v989, %v1149
        %v1151 = vpop.f32.mrb[0].mxu0
        %1152 = vmatprep.mubr.bf16.mxu0 %v626
        %1153 = vmatmul.mubr.bf16.gmra.mrb[0].mxu0 %v625
        %v1154 = vpop.f32.mrb[0].mxu0
        %v1155 = vadd.f32 %v994, %v1154
        %v1156 = vpop.f32.mrb[0].mxu0
        %v1157 = vpop.f32.mrb[0].mxu0
        %v1158 = vadd.f32 %v997, %v1157
        %v1159 = vpop.f32.mrb[0].mxu0
        %1160 = vmatprep.mubr.bf16.mxu0 %v630
        %1161 = vmatmul.mubr.bf16.gmra.mrb[0].mxu0 %v629
        %v1162 = vpop.f32.mrb[0].mxu0
        %v1163 = vadd.f32 %v1002, %v1162
        %v1164 = vpop.f32.mrb[0].mxu0
        %v1165 = vpop.f32.mrb[0].mxu0
        %v1166 = vadd.f32 %v1005, %v1165
        %v1167 = vpop.f32.mrb[0].mxu0
        %1168 = vmatprep.mubr.bf16.mxu0 %v634
        %1169 = vmatmul.mubr.bf16.gmra.mrb[0].mxu0 %v633
        %v1170 = vpop.f32.mrb[0].mxu0
        %v1171 = vadd.f32 %v1010, %v1170
        %v1172 = vpop.f32.mrb[0].mxu0
        %v1173 = vpop.f32.mrb[0].mxu0
        %v1174 = vadd.f32 %v1013, %v1173
        %v1175 = vpop.f32.mrb[0].mxu0
        %1176 = vmatprep.mubr.bf16.mxu0 %v638
        %1177 = vmatmul.mubr.bf16.gmra.mrb[0].mxu0 %v637
        %v1178 = vpop.f32.mrb[0].mxu0
        %v1179 = vadd.f32 %v1018, %v1178
        %v1180 = vpop.f32.mrb[0].mxu0
        %v1181 = vpop.f32.mrb[0].mxu0
        %v1182 = vadd.f32 %v1021, %v1181
        %v1183 = vpop.f32.mrb[0].mxu0
        %1184 = vmatprep.mubr.bf16.mxu0 %v642
        %1185 = vmatmul.mubr.bf16.gmra.mrb[0].mxu0 %v641
        %v1186 = vpop.f32.mrb[0].mxu0
        %v1187 = vadd.f32 %v1026, %v1186
        %v1188 = vpop.f32.mrb[0].mxu0
        %v1189 = vpop.f32.mrb[0].mxu0
        %v1190 = vadd.f32 %v1029, %v1189
        %v1191 = vpop.f32.mrb[0].mxu0
        %1192 = vmatprep.mubr.bf16.mxu0 %v646
        %1193 = vmatmul.mubr.bf16.gmra.mrb[0].mxu0 %v645
        %v1194 = vpop.f32.mrb[0].mxu0
        %v1195 = vadd.f32 %v1034, %v1194
        %v1196 = vpop.f32.mrb[0].mxu0
        %v1197 = vpop.f32.mrb[0].mxu0
        %v1198 = vadd.f32 %v1037, %v1197
        %v1199 = vpop.f32.mrb[0].mxu0
        %1200 = vmatprep.mubr.bf16.mxu0 %v650
        %1201 = vmatmul.mubr.bf16.gmra.mrb[0].mxu0 %v649
        %v1202 = vpop.f32.mrb[0].mxu0
        %v1203 = vadd.f32 %v1042, %v1202
        %v1204 = vpop.f32.mrb[0].mxu0
        %v1205 = vpop.f32.mrb[0].mxu0
        %v1206 = vadd.f32 %v1045, %v1205
        %v1207 = vpop.f32.mrb[0].mxu0
        %1208 = vmatprep.mubr.bf16.mxu0 %v654
        %1209 = vmatmul.mubr.bf16.gmra.mrb[0].mxu0 %v653
        %v1210 = vpop.f32.mrb[0].mxu0
        %v1211 = vadd.f32 %v1050, %v1210
        %v1212 = vpop.f32.mrb[0].mxu0
        %v1213 = vpop.f32.mrb[0].mxu0
        %v1214 = vadd.f32 %v1053, %v1213
        %v1215 = vpop.f32.mrb[0].mxu0
        %1216 = vmatprep.mubr.bf16.mxu0 %v658
        %1217 = vmatmul.mubr.bf16.gmra.mrb[0].mxu0 %v657
        %v1218 = vpop.f32.mrb[0].mxu0
        %v1219 = vadd.f32 %v1058, %v1218
        %v1220 = vpop.f32.mrb[0].mxu0
        %v1221 = vpop.f32.mrb[0].mxu0
        %v1222 = vadd.f32 %v1061, %v1221
        %v1223 = vpop.f32.mrb[0].mxu0
        %1224 = vmatprep.mubr.bf16.mxu0 %v662
        %1225 = vmatmul.mubr.bf16.gmra.mrb[0].mxu0 %v661
        %v1226 = vpop.f32.mrb[0].mxu0
        %v1227 = vadd.f32 %v1066, %v1226
        %v1228 = vpop.f32.mrb[0].mxu0
        %v1229 = vpop.f32.mrb[0].mxu0
        %v1230 = vadd.f32 %v1069, %v1229
        %v1231 = vpop.f32.mrb[0].mxu0
        %1232 = vmatprep.mubr.bf16.mxu0 %v666
        %1233 = vmatmul.mubr.bf16.gmra.mrb[0].mxu0 %v665
        %v1234 = vpop.f32.mrb[0].mxu0
        %v1235 = vadd.f32 %v1074, %v1234
        %v1236 = vpop.f32.mrb[0].mxu0
        %v1237 = vpop.f32.mrb[0].mxu0
        %v1238 = vadd.f32 %v1077, %v1237
        %v1239 = vpop.f32.mrb[0].mxu0
        %1240 = vmatprep.mubr.bf16.mxu0 %v670
        %1241 = vmatmul.mubr.bf16.gmra.mrb[0].mxu0 %v669
        %v1242 = vpop.f32.mrb[0].mxu0
        %v1243 = vadd.f32 %v1082, %v1242
        %v1244 = vpop.f32.mrb[0].mxu0
        %v1245 = vpop.f32.mrb[0].mxu0
        %v1246 = vadd.f32 %v1085, %v1245
        %v1247 = vpop.f32.mrb[0].mxu0
        %1248 = vdwg.mxu0
        %v1249 = vadd.f32 %v255, %v1123
        %v1250 = vadd.f32 %v256, %v1126
        %v1251 = vadd.f32 %v257, %v1131
        %v1252 = vadd.f32 %v258, %v1134
        %v1253 = vadd.f32 %v259, %v1139
        %v1254 = vadd.f32 %v260, %v1142
        %v1255 = vadd.f32 %v261, %v1147
        %v1256 = vadd.f32 %v262, %v1150
        %v1257 = vadd.f32 %v263, %v1155
        %v1258 = vadd.f32 %v264, %v1158
        %v1259 = vadd.f32 %v265, %v1163
        %v1260 = vadd.f32 %v266, %v1166
        %v1261 = vadd.f32 %v267, %v1171
        %v1262 = vadd.f32 %v268, %v1174
        %v1263 = vadd.f32 %v269, %v1179
        %v1264 = vadd.f32 %v270, %v1182
        %v1265 = vadd.f32 %v271, %v1187
        %v1266 = vadd.f32 %v272, %v1190
        %v1267 = vadd.f32 %v273, %v1195
        %v1268 = vadd.f32 %v274, %v1198
        %v1269 = vadd.f32 %v275, %v1203
        %v1270 = vadd.f32 %v276, %v1206
        %v1271 = vadd.f32 %v277, %v1211
        %v1272 = vadd.f32 %v278, %v1214
        %v1273 = vadd.f32 %v279, %v1219
        %v1274 = vadd.f32 %v280, %v1222
        %v1275 = vadd.f32 %v281, %v1227
        %v1276 = vadd.f32 %v282, %v1230
        %v1277 = vadd.f32 %v283, %v1235
        %v1278 = vadd.f32 %v284, %v1238
        %v1279 = vadd.f32 %v285, %v1243
        %v1280 = vadd.f32 %v286, %v1246
        %1281 = vst [vmem:[#allocation2] sm:$0xff] %v1249
        %1282 = vst [vmem:[#allocation2 + $0x8] sm:$0xff] %v1250
        %1283 = vst [vmem:[#allocation2 + $0x10] sm:$0xff] %v1251
        %1284 = vst [vmem:[#allocation2 + $0x18] sm:$0xff] %v1252
        %1285 = vst [vmem:[#allocation2 + $0x20] sm:$0xff] %v1253
        %1286 = vst [vmem:[#allocation2 + $0x28] sm:$0xff] %v1254
        %1287 = vst [vmem:[#allocation2 + $0x30] sm:$0xff] %v1255
        %1288 = vst [vmem:[#allocation2 + $0x38] sm:$0xff] %v1256
        %1289 = vst [vmem:[#allocation2 + $0x40] sm:$0xff] %v1257
        %1290 = vst [vmem:[#allocation2 + $0x48] sm:$0xff] %v1258
        %1291 = vst [vmem:[#allocation2 + $0x50] sm:$0xff] %v1259
        %1292 = vst [vmem:[#allocation2 + $0x58] sm:$0xff] %v1260
        %1293 = vst [vmem:[#allocation2 + $0x60] sm:$0xff] %v1261
        %1294 = vst [vmem:[#allocation2 + $0x68] sm:$0xff] %v1262
        %1295 = vst [vmem:[#allocation2 + $0x70] sm:$0xff] %v1263
        %1296 = vst [vmem:[#allocation2 + $0x78] sm:$0xff] %v1264
        %1297 = vst [vmem:[#allocation2 + $0x80] sm:$0xff] %v1265
        %1298 = vst [vmem:[#allocation2 + $0x88] sm:$0xff] %v1266
        %1299 = vst [vmem:[#allocation2 + $0x90] sm:$0xff] %v1267
        %1300 = vst [vmem:[#allocation2 + $0x98] sm:$0xff] %v1268
        %1301 = vst [vmem:[#allocation2 + $0xa0] sm:$0xff] %v1269
        %1302 = vst [vmem:[#allocation2 + $0xa8] sm:$0xff] %v1270
        %1303 = vst [vmem:[#allocation2 + $0xb0] sm:$0xff] %v1271
        %1304 = vst [vmem:[#allocation2 + $0xb8] sm:$0xff] %v1272
        %1305 = vst [vmem:[#allocation2 + $0xc0] sm:$0xff] %v1273
        %1306 = vst [vmem:[#allocation2 + $0xc8] sm:$0xff] %v1274
        %1307 = vst [vmem:[#allocation2 + $0xd0] sm:$0xff] %v1275
        %1308 = vst [vmem:[#allocation2 + $0xd8] sm:$0xff] %v1276
        %1309 = vst [vmem:[#allocation2 + $0xe0] sm:$0xff] %v1277
        %1310 = vst [vmem:[#allocation2 + $0xe8] sm:$0xff] %v1278
        %1311 = vst [vmem:[#allocation2 + $0xf0] sm:$0xff] %v1279
        %1312 = vst [vmem:[#allocation2 + $0xf8] sm:$0xff] %v1280
        // Predicated region
        $region41: #{tpu_custom_call.1} parent=27 // pred_check
          %p1313 = pneg %p219
        $region42: #{tpu_custom_call.1} parent=27 // pred_check_branch
          %1315 = sbr.rel (%p1313) target = $region44
        $region43: #{tpu_custom_call.1} parent=27 // pred_region
          %v1316 = vld [vmem:[#allocation2] sm:$0xff]
          %v1317 = vld [vmem:[#allocation2 + $0x8] sm:$0xff]
          %v1318 = vld [vmem:[#allocation2 + $0x10] sm:$0xff]
          %v1319 = vld [vmem:[#allocation2 + $0x18] sm:$0xff]
          %v1320 = vld [vmem:[#allocation2 + $0x20] sm:$0xff]
          %v1321 = vld [vmem:[#allocation2 + $0x28] sm:$0xff]
          %v1322 = vld [vmem:[#allocation2 + $0x30] sm:$0xff]
          %v1323 = vld [vmem:[#allocation2 + $0x38] sm:$0xff]
          %v1324 = vld [vmem:[#allocation2 + $0x40] sm:$0xff]
          %v1325 = vld [vmem:[#allocation2 + $0x48] sm:$0xff]
          %v1326 = vld [vmem:[#allocation2 + $0x50] sm:$0xff]
          %v1327 = vld [vmem:[#allocation2 + $0x58] sm:$0xff]
          %v1328 = vld [vmem:[#allocation2 + $0x60] sm:$0xff]
          %v1329 = vld [vmem:[#allocation2 + $0x68] sm:$0xff]
          %v1330 = vld [vmem:[#allocation2 + $0x70] sm:$0xff]
          %v1331 = vld [vmem:[#allocation2 + $0x78] sm:$0xff]
          %v1332 = vld [vmem:[#allocation2 + $0x80] sm:$0xff]
          %v1333 = vld [vmem:[#allocation2 + $0x88] sm:$0xff]
          %v1334 = vld [vmem:[#allocation2 + $0x90] sm:$0xff]
          %v1335 = vld [vmem:[#allocation2 + $0x98] sm:$0xff]
          %v1336 = vld [vmem:[#allocation2 + $0xa0] sm:$0xff]
          %v1337 = vld [vmem:[#allocation2 + $0xa8] sm:$0xff]
          %v1338 = vld [vmem:[#allocation2 + $0xb0] sm:$0xff]
          %v1339 = vld [vmem:[#allocation2 + $0xb8] sm:$0xff]
          %v1340 = vld [vmem:[#allocation2 + $0xc0] sm:$0xff]
          %v1341 = vld [vmem:[#allocation2 + $0xc8] sm:$0xff]
          %v1342 = vld [vmem:[#allocation2 + $0xd0] sm:$0xff]
          %v1343 = vld [vmem:[#allocation2 + $0xd8] sm:$0xff]
          %v1344 = vld [vmem:[#allocation2 + $0xe0] sm:$0xff]
          %v1345 = vld [vmem:[#allocation2 + $0xe8] sm:$0xff]
          %v1346 = vld [vmem:[#allocation2 + $0xf0] sm:$0xff]
          %v1347 = vld [vmem:[#allocation2 + $0xf8] sm:$0xff]
          %1348 = vst [vmem:[%s213] sm:$0xff] %v1316
          %1349 = vst [vmem:[%s213 + $0x8] sm:$0xff] %v1317
          %1350 = vst [vmem:[%s213 + $0x10] sm:$0xff] %v1318
          %1351 = vst [vmem:[%s213 + $0x18] sm:$0xff] %v1319
          %1352 = vst [vmem:[%s213 + $0x20] sm:$0xff] %v1320
          %1353 = vst [vmem:[%s213 + $0x28] sm:$0xff] %v1321
          %1354 = vst [vmem:[%s213 + $0x30] sm:$0xff] %v1322
          %1355 = vst [vmem:[%s213 + $0x38] sm:$0xff] %v1323
          %1356 = vst [vmem:[%s213 + $0x40] sm:$0xff] %v1324
          %1357 = vst [vmem:[%s213 + $0x48] sm:$0xff] %v1325
          %1358 = vst [vmem:[%s213 + $0x50] sm:$0xff] %v1326
          %1359 = vst [vmem:[%s213 + $0x58] sm:$0xff] %v1327
          %1360 = vst [vmem:[%s213 + $0x60] sm:$0xff] %v1328
          %1361 = vst [vmem:[%s213 + $0x68] sm:$0xff] %v1329
          %1362 = vst [vmem:[%s213 + $0x70] sm:$0xff] %v1330
          %1363 = vst [vmem:[%s213 + $0x78] sm:$0xff] %v1331
          %1364 = vst [vmem:[%s213 + $0x80] sm:$0xff] %v1332
          %1365 = vst [vmem:[%s213 + $0x88] sm:$0xff] %v1333
          %1366 = vst [vmem:[%s213 + $0x90] sm:$0xff] %v1334
          %1367 = vst [vmem:[%s213 + $0x98] sm:$0xff] %v1335
          %1368 = vst [vmem:[%s213 + $0xa0] sm:$0xff] %v1336
          %1369 = vst [vmem:[%s213 + $0xa8] sm:$0xff] %v1337
          %1370 = vst [vmem:[%s213 + $0xb0] sm:$0xff] %v1338
          %1371 = vst [vmem:[%s213 + $0xb8] sm:$0xff] %v1339
          %1372 = vst [vmem:[%s213 + $0xc0] sm:$0xff] %v1340
          %1373 = vst [vmem:[%s213 + $0xc8] sm:$0xff] %v1341
          %1374 = vst [vmem:[%s213 + $0xd0] sm:$0xff] %v1342
          %1375 = vst [vmem:[%s213 + $0xd8] sm:$0xff] %v1343
          %1376 = vst [vmem:[%s213 + $0xe0] sm:$0xff] %v1344
          %1377 = vst [vmem:[%s213 + $0xe8] sm:$0xff] %v1345
          %1378 = vst [vmem:[%s213 + $0xf0] sm:$0xff] %v1346
          %1379 = vst [vmem:[%s213 + $0xf8] sm:$0xff] %v1347
        $region44: #{tpu_custom_call.1} parent=27 // pred_fallthru
          _
        %s1380 = sand.u32 %s105, 1
        %s1381 = scalar_lea.sflag [#allocation5], %s1380
        %s1382 = sand.u32 %s105, 1
        %s1383 = smul.addr %s1382, 256
        %s1384 = scalar_lea.vmem [#allocation8], %s1383
        // Predicated region
        $region45: #{tpu_custom_call.1} parent=27 // pred_check
          %p1385 = pneg %p115
        $region46: #{tpu_custom_call.1} parent=27 // pred_check_branch
          %1387 = sbr.rel (%p1385) target = $region48
        $region47: #{tpu_custom_call.1} parent=27 // pred_region
          %s1388 = smul.u32 32, %s25
          %s1390 = ssub.s32 4096, 4096
          %1391 = vsyncadd %s1381, %s1390
          %s1392 = sadd.s32 %s26, %s1388
          %s1393 = smul.addr %s1392, 128
          %s1394 = scalar_lea.hbm %s2, %s1393
          %s1395 = sshll.u32 %s1384, 4
          %s1396 = int_to_ptr.vmem [resolvable:$true] %s1395
          %1401 = dma.vmem_to_hbm [thread:$0]  %s1396, 4096, %s1394, %s1381, 128, 128, 8
        $region48: #{tpu_custom_call.1} parent=27 // pred_fallthru
          _
      $region28: #{tpu_custom_call.1} parent=5 // pred_fallthru
        _
      %p1402 = scmp.le.s32.totalorder 2, %s15
      // Predicated region
      $region49: #{tpu_custom_call.1} parent=5 // pred_check
        %p1403 = pneg %p1402
      $region50: #{tpu_custom_call.1} parent=5 // pred_check_branch
        %1405 = sbr.rel (%p1403) target = $region52
      $region51: #{tpu_custom_call.1} parent=5 // pred_region
        %s1406 = ssub.s32 %s15, 2
        // Predicated region
        $region53: #{tpu_custom_call.1} parent=51 // pred_check
          %p1407 = pneg %p121
        $region54: #{tpu_custom_call.1} parent=51 // pred_check_branch
          %1409 = sbr.rel (%p1407) target = $region56
        $region55: #{tpu_custom_call.1} parent=51 // pred_region
          %s1410 = sand.u32 %s106, 1
          %s1411 = scalar_lea.sflag [#allocation5], %s1410
          %s1412 = sand.u32 %s106, 1
          %s1413 = smul.addr %s1412, 256
          %s1414 = scalar_lea.vmem [#allocation8], %s1413
          %1415 = dma.done %s1411, 4096
        $region56: #{tpu_custom_call.1} parent=51 // pred_fallthru
          _
      $region52: #{tpu_custom_call.1} parent=5 // pred_fallthru
        _
    $region6: #{tpu_custom_call.1} parent=1 // loop_footer
      %s19 = sadd.s32 1, %s15
    $region7: #{tpu_custom_call.1} parent=1 // loop_footer_branch
      %14 = sbr.rel target = $region3
    $region8: #{tpu_custom_call.1} parent=1 // loop_exit
      _
    %1416 = vsyncpa [#allocation4], 1
    %s1417 = scalar_lea.sflag [#allocation4], 1
    %1418 = vsyncpa %s1417, 1
    %1419 = vsyncpa [#allocation7], 1
    %1420 = vsyncpa [#allocation5], 1
    %s1421 = scalar_lea.sflag [#allocation5], 1
    %1422 = vsyncpa %s1421, 1

</llo_original>
